<compile_context>
chip_gen: v7x
topology: tpu7x:2x2x1
jax: 0.10.0
libtpu: 0.0.40
codegen_flags: <defaults>
</compile_context>

<pallas_src>
import jax
import jax.numpy as jnp
from jax import lax
from jax.experimental import pallas as pl
from jax.experimental.pallas import tpu as pltpu

# ----------------- small RoBERTa-like config -----------------
BATCH = 2
SEQ = 8
HIDDEN = 128
HEADS = 4
HEAD_DIM = HIDDEN // HEADS
INTER = 256
LAYERS = 2
VOCAB = 1000
MAX_POS = 64
PAD_IDX = 1          # RoBERTa padding_idx (positions start at PAD_IDX + 1)
LN_EPS = 1e-5
NUM_CLASSES = 2
CLS_PAD = 128        # lane-dense padded width for the 2-class logits
DTYPE = jnp.float32


# ----------------- fused Pallas kernel -----------------

def _layernorm(x, g, b):
    mu = jnp.mean(x, axis=-1, keepdims=True)
    var = jnp.mean((x - mu) ** 2, axis=-1, keepdims=True)
    return (x - mu) * lax.rsqrt(var + LN_EPS) * g + b


def _encoder_kernel(emb_ref, bias_ref, eg_ref, eb_ref,
                    wqkv_ref, bqkv_ref, wo_ref, bo_ref, g1_ref, b1_ref,
                    wi_ref, bi_ref, wo2_ref, bo2_ref, g2_ref, b2_ref,
                    cw1_ref, cb1_ref, cw2_ref, cb2_ref,
                    out_ref, h_ref):
    """One (batch, layer) grid step of the fused encoder + classifier."""
    layer = pl.program_id(1)

    # ---- embeddings + LayerNorm, only on the first layer step of each batch ----
    @pl.when(layer == 0)
    def _():
        h_ref[...] = _layernorm(emb_ref[...].astype(jnp.float32),
                                eg_ref[...], eb_ref[...])
        # TODO(synk): nn.Dropout(0.1) after the embedding LN is identity at inference.

    h = h_ref[...]                                                  # (S, H) f32

    # ---- fused QKV projection: one (S,H) @ (H,3H) MXU matmul ----
    qkv = jnp.dot(h, wqkv_ref[...], preferred_element_type=jnp.float32) + bqkv_ref[...]
    q = qkv[:, 0:HIDDEN]                 # vreg-aligned 128-lane slices
    k = qkv[:, HIDDEN:2 * HIDDEN]
    v = qkv[:, 2 * HIDDEN:3 * HIDDEN]
    bias = bias_ref[...]                 # (1, S) additive attention-mask bias

    # ---- all-heads self-attention, lane-dense ----
    # Per-head lane masks keep every op 128 lanes wide. The masked per-head Q rows
    # are stacked along the sublane axis, so all head scores come out of a single
    # MXU matmul and share one softmax; context is recombined with static sublane
    # slices + lane masks (VPU only).
    lane = lax.broadcasted_iota(jnp.int32, (1, HIDDEN), 1)
    masks = [((lane >= hd * HEAD_DIM) & (lane < (hd + 1) * HEAD_DIM)).astype(jnp.float32)
             for hd in range(HEADS)]
    scale = 1.0 / (HEAD_DIM ** 0.5)

    q_stack = jnp.concatenate([q * m for m in masks], axis=0)       # (HEADS*S, H)
    s = lax.dot_general(q_stack, k, (((1,), (1,)), ((), ())),
                        preferred_element_type=jnp.float32) * scale + bias  # (HEADS*S, S)
    s = s - jnp.max(s, axis=-1, keepdims=True)
    p = jnp.exp(s)
    p = p * pl.reciprocal(jnp.sum(p, axis=-1, keepdims=True), approx=True)
    pv = jnp.dot(p, v, preferred_element_type=jnp.float32)          # (HEADS*S, H)

    ctx = jnp.zeros((SEQ, HIDDEN), jnp.float32)
    for hd in range(HEADS):
        ctx = ctx + pv[hd * SEQ:(hd + 1) * SEQ, :] * masks[hd]

    attn = jnp.dot(ctx, wo_ref[...], preferred_element_type=jnp.float32) + bo_ref[...]
    h = _layernorm(attn + h, g1_ref[...], b1_ref[...])

    # ---- feed-forward ----
    ff = jnp.dot(h, wi_ref[...], preferred_element_type=jnp.float32) + bi_ref[...]
    ff = jax.nn.gelu(ff, approximate=True)   # TODO(synk): HF uses exact erf-GELU
    ff = jnp.dot(ff, wo2_ref[...], preferred_element_type=jnp.float32) + bo2_ref[...]
    h = _layernorm(ff + h, g2_ref[...], b2_ref[...])
    h_ref[...] = h

    # ---- CLS pooling + classifier head fused into the last layer step ----
    @pl.when(layer == LAYERS - 1)
    def _():
        # TODO(synk): dropout before the classifier is identity at inference.
        cls = h[0:1, :]                                             # (1, H) CLS row
        hid = jnp.dot(cls, cw1_ref[...], preferred_element_type=jnp.float32) + cb1_ref[...]
        hid = jnp.maximum(hid, 0.0)
        logits = jnp.dot(hid, cw2_ref[...], preferred_element_type=jnp.float32) + cb2_ref[...]
        out_ref[...] = logits.astype(out_ref.dtype)                 # (1, 128) lane-dense


# ----------------- parameters (deterministic, synthetic) -----------------

def init_params(key):
    def nrm(k, shape):
        return (0.02 * jax.random.normal(k, shape, jnp.float32)).astype(DTYPE)

    ks = iter(jax.random.split(key, 16))
    return {
        "word_emb": nrm(next(ks), (VOCAB, HIDDEN)),
        "pos_emb": nrm(next(ks), (MAX_POS, HIDDEN)),
        "type_emb": nrm(next(ks), (1, HIDDEN)),
        "emb_ln_g": jnp.ones((1, HIDDEN), DTYPE),
        "emb_ln_b": jnp.zeros((1, HIDDEN), DTYPE),
        # per-layer weights stacked on a leading LAYERS axis so the fused kernel's
        # layer grid axis can select them via index_map (QKV pre-concatenated).
        "wqkv": nrm(next(ks), (LAYERS, HIDDEN, 3 * HIDDEN)),
        "bqkv": jnp.zeros((LAYERS, 1, 3 * HIDDEN), DTYPE),
        "wo": nrm(next(ks), (LAYERS, HIDDEN, HIDDEN)),
        "bo": jnp.zeros((LAYERS, 1, HIDDEN), DTYPE),
        "ln1_g": jnp.ones((LAYERS, 1, HIDDEN), DTYPE),
        "ln1_b": jnp.zeros((LAYERS, 1, HIDDEN), DTYPE),
        "wi": nrm(next(ks), (LAYERS, HIDDEN, INTER)),
        "bi": jnp.zeros((LAYERS, 1, INTER), DTYPE),
        "wo2": nrm(next(ks), (LAYERS, INTER, HIDDEN)),
        "bo2": jnp.zeros((LAYERS, 1, HIDDEN), DTYPE),
        "ln2_g": jnp.ones((LAYERS, 1, HIDDEN), DTYPE),
        "ln2_b": jnp.zeros((LAYERS, 1, HIDDEN), DTYPE),
        # classifier: Linear(H, H) -> ReLU -> Linear(H, 2)
        "cls_w1": nrm(next(ks), (HIDDEN, HIDDEN)),
        "cls_b1": jnp.zeros((1, HIDDEN), DTYPE),
        "cls_w2": nrm(next(ks), (HIDDEN, NUM_CLASSES)),
        "cls_b2": jnp.zeros((1, NUM_CLASSES), DTYPE),
    }


# ----------------- forward pass -----------------

def codebert_classifier_forward(params, input_ids, attention_mask):
    B, S = input_ids.shape

    # Embedding gathers + RoBERTa position ids: XLA glue (table gathers are not a
    # rectangular BlockSpec access); everything after this runs in the fused kernel.
    mask_i = attention_mask.astype(jnp.int32)
    pos_ids = (jnp.cumsum(mask_i, axis=1) * mask_i + PAD_IDX).astype(jnp.int32)
    emb = (params["word_emb"][input_ids]
           + params["pos_emb"][pos_ids]
           + params["type_emb"][0][None, None, :]).astype(DTYPE)      # (B, S, H)

    # additive attention-mask bias, one tiny (1, S) row per batch
    bias = ((1.0 - attention_mask.astype(jnp.float32)) * -1e9).astype(DTYPE)
    bias = bias.reshape(B, 1, S)

    # pad the 2-class classifier output up to a lane-dense 128 columns
    cw2 = jnp.zeros((HIDDEN, CLS_PAD), DTYPE).at[:, :NUM_CLASSES].set(params["cls_w2"])
    cb2 = jnp.zeros((1, CLS_PAD), DTYPE).at[:, :NUM_CLASSES].set(params["cls_b2"])

    const2 = lambda b, l: (0, 0)
    per_batch3 = lambda b, l: (b, 0, 0)
    per_layer3 = lambda b, l: (l, 0, 0)

    grid_spec = pltpu.PrefetchScalarGridSpec(
        num_scalar_prefetch=0,
        grid=(B, LAYERS),
        in_specs=[
            pl.BlockSpec((None, S, HIDDEN), per_batch3),            # emb
            pl.BlockSpec((None, 1, S), per_batch3),                 # mask bias
            pl.BlockSpec((1, HIDDEN), const2),                      # emb LN gamma
            pl.BlockSpec((1, HIDDEN), const2),                      # emb LN beta
            pl.BlockSpec((None, HIDDEN, 3 * HIDDEN), per_layer3),   # wqkv
            pl.BlockSpec((None, 1, 3 * HIDDEN), per_layer3),        # bqkv
            pl.BlockSpec((None, HIDDEN, HIDDEN), per_layer3),       # wo
            pl.BlockSpec((None, 1, HIDDEN), per_layer3),            # bo
            pl.BlockSpec((None, 1, HIDDEN), per_layer3),            # ln1_g
            pl.BlockSpec((None, 1, HIDDEN), per_layer3),            # ln1_b
            pl.BlockSpec((None, HIDDEN, INTER), per_layer3),        # wi
            pl.BlockSpec((None, 1, INTER), per_layer3),             # bi
            pl.BlockSpec((None, INTER, HIDDEN), per_layer3),        # wo2
            pl.BlockSpec((None, 1, HIDDEN), per_layer3),            # bo2
            pl.BlockSpec((None, 1, HIDDEN), per_layer3),            # ln2_g
            pl.BlockSpec((None, 1, HIDDEN), per_layer3),            # ln2_b
            pl.BlockSpec((HIDDEN, HIDDEN), const2),                 # cls_w1
            pl.BlockSpec((1, HIDDEN), const2),                      # cls_b1
            pl.BlockSpec((HIDDEN, CLS_PAD), const2),                # cls_w2 (padded)
            pl.BlockSpec((1, CLS_PAD), const2),                     # cls_b2 (padded)
        ],
        out_specs=pl.BlockSpec((None, 1, CLS_PAD), per_batch3),
        scratch_shapes=[pltpu.VMEM((SEQ, HIDDEN), jnp.float32)],    # resident hidden state
    )

    logits_pad = pl.pallas_call(
        _encoder_kernel,
        out_shape=jax.ShapeDtypeStruct((B, 1, CLS_PAD), DTYPE),
        grid_spec=grid_spec,
        compiler_params=pltpu.CompilerParams(
            dimension_semantics=("parallel", "arbitrary"),
            vmem_limit_bytes=16 * 1024 * 1024),
    )(emb, bias,
      params["emb_ln_g"], params["emb_ln_b"],
      params["wqkv"], params["bqkv"], params["wo"], params["bo"],
      params["ln1_g"], params["ln1_b"],
      params["wi"], params["bi"], params["wo2"], params["bo2"],
      params["ln2_g"], params["ln2_b"],
      params["cls_w1"], params["cls_b1"], cw2, cb2)

    return logits_pad.reshape(B, CLS_PAD)[:, :NUM_CLASSES]


# ----------------- main -----------------

if __name__ == "__main__":
    root = jax.random.PRNGKey(0)
    k_param, k_ids = jax.random.split(root)

    params = init_params(k_param)
    input_ids = jax.random.randint(k_ids, (BATCH, SEQ), 0, VOCAB, dtype=jnp.int32)
    attention_mask = jnp.ones((BATCH, SEQ), dtype=jnp.int32)

    logits = jax.jit(codebert_classifier_forward)(params, input_ids, attention_mask)
    logits = jax.block_until_ready(logits)

    assert logits.shape == (BATCH, NUM_CLASSES)
    assert bool(jnp.all(jnp.isfinite(logits)))
    print("KERNEL_OK")
</pallas_src>

<mosaic_0001>
module attributes {stable_mosaic.version = 11 : i64} {
  func.func @_encoder_kernel(%arg0: i32, %arg1: i32, %arg2: memref<1x8x128xf32, #tpu.memory_space<vmem>>, %arg3: memref<1x1x8xf32, #tpu.memory_space<vmem>>, %arg4: memref<1x128xf32, #tpu.memory_space<vmem>>, %arg5: memref<1x128xf32, #tpu.memory_space<vmem>>, %arg6: memref<1x128x384xf32, #tpu.memory_space<vmem>>, %arg7: memref<1x1x384xf32, #tpu.memory_space<vmem>>, %arg8: memref<1x128x128xf32, #tpu.memory_space<vmem>>, %arg9: memref<1x1x128xf32, #tpu.memory_space<vmem>>, %arg10: memref<1x1x128xf32, #tpu.memory_space<vmem>>, %arg11: memref<1x1x128xf32, #tpu.memory_space<vmem>>, %arg12: memref<1x128x256xf32, #tpu.memory_space<vmem>>, %arg13: memref<1x1x256xf32, #tpu.memory_space<vmem>>, %arg14: memref<1x256x128xf32, #tpu.memory_space<vmem>>, %arg15: memref<1x1x128xf32, #tpu.memory_space<vmem>>, %arg16: memref<1x1x128xf32, #tpu.memory_space<vmem>>, %arg17: memref<1x1x128xf32, #tpu.memory_space<vmem>>, %arg18: memref<128x128xf32, #tpu.memory_space<vmem>>, %arg19: memref<1x128xf32, #tpu.memory_space<vmem>>, %arg20: memref<128x128xf32, #tpu.memory_space<vmem>>, %arg21: memref<1x128xf32, #tpu.memory_space<vmem>>, %arg22: memref<1x1x128xf32, #tpu.memory_space<vmem>>, %arg23: memref<8x128xf32, #tpu.memory_space<vmem>>) attributes {dimension_semantics = [#tpu.dimension_semantics<parallel>, #tpu.dimension_semantics<arbitrary>], iteration_bounds = array<i64: 2, 2>, scalar_prefetch = 0 : i64, scratch_operands = 1 : i64, tpu.core_type = #tpu.core_type<tc>, window_params = [{transform_indices = @transform_0, window_bounds = array<i64: 1, 8, 128>}, {transform_indices = @transform_1, window_bounds = array<i64: 1, 1, 8>}, {pipeline_mode = #tpu.pipeline_mode<synchronous>, transform_indices = @transform_2, window_bounds = array<i64: 1, 128>}, {pipeline_mode = #tpu.pipeline_mode<synchronous>, transform_indices = @transform_3, window_bounds = array<i64: 1, 128>}, {transform_indices = @transform_4, window_bounds = array<i64: 1, 128, 384>}, {transform_indices = @transform_5, window_bounds = array<i64: 1, 1, 384>}, {transform_indices = @transform_6, window_bounds = array<i64: 1, 128, 128>}, {transform_indices = @transform_7, window_bounds = array<i64: 1, 1, 128>}, {transform_indices = @transform_8, window_bounds = array<i64: 1, 1, 128>}, {transform_indices = @transform_9, window_bounds = array<i64: 1, 1, 128>}, {transform_indices = @transform_10, window_bounds = array<i64: 1, 128, 256>}, {transform_indices = @transform_11, window_bounds = array<i64: 1, 1, 256>}, {transform_indices = @transform_12, window_bounds = array<i64: 1, 256, 128>}, {transform_indices = @transform_13, window_bounds = array<i64: 1, 1, 128>}, {transform_indices = @transform_14, window_bounds = array<i64: 1, 1, 128>}, {transform_indices = @transform_15, window_bounds = array<i64: 1, 1, 128>}, {pipeline_mode = #tpu.pipeline_mode<synchronous>, transform_indices = @transform_16, window_bounds = array<i64: 128, 128>}, {pipeline_mode = #tpu.pipeline_mode<synchronous>, transform_indices = @transform_17, window_bounds = array<i64: 1, 128>}, {pipeline_mode = #tpu.pipeline_mode<synchronous>, transform_indices = @transform_18, window_bounds = array<i64: 128, 128>}, {pipeline_mode = #tpu.pipeline_mode<synchronous>, transform_indices = @transform_19, window_bounds = array<i64: 1, 128>}, {transform_indices = @transform_20, window_bounds = array<i64: 1, 1, 128>}]} {
    %c0_i32 = arith.constant 0 : i32
    %0 = arith.cmpi eq, %arg1, %c0_i32 : i32
    %1 = arith.extui %0 : i1 to i32
    %c0_i32_0 = arith.constant 0 : i32
    %2 = arith.cmpi ne, %1, %c0_i32_0 : i32
    scf.if %2 {
      %c0_71 = arith.constant 0 : index
      %c0_72 = arith.constant 0 : index
      %c0_73 = arith.constant 0 : index
      %179 = vector.load %arg2[%c0_71, %c0_72, %c0_73] : memref<1x8x128xf32, #tpu.memory_space<vmem>>, vector<1x8x128xf32>
      %180 = vector.shape_cast %179 : vector<1x8x128xf32> to vector<8x128xf32>
      %c0_74 = arith.constant 0 : index
      %c0_75 = arith.constant 0 : index
      %181 = vector.load %arg4[%c0_74, %c0_75] : memref<1x128xf32, #tpu.memory_space<vmem>>, vector<1x128xf32>
      %c0_76 = arith.constant 0 : index
      %c0_77 = arith.constant 0 : index
      %182 = vector.load %arg5[%c0_76, %c0_77] : memref<1x128xf32, #tpu.memory_space<vmem>>, vector<1x128xf32>
      %cst_78 = arith.constant dense<0.000000e+00> : vector<8xf32>
      %183 = vector.multi_reduction <add>, %180, %cst_78 [1] : vector<8x128xf32> to vector<8xf32>
      %184 = vector.shape_cast %183 : vector<8xf32> to vector<8x1xf32>
      %cst_79 = arith.constant 1.280000e+02 : f32
      %185 = vector.broadcast %cst_79 : f32 to vector<8x1xf32>
      %186 = arith.divf %184, %185 : vector<8x1xf32>
      %187 = vector.broadcast %186 : vector<8x1xf32> to vector<8x128xf32>
      %188 = arith.subf %180, %187 : vector<8x128xf32>
      %189 = arith.mulf %188, %188 : vector<8x128xf32>
      %cst_80 = arith.constant dense<0.000000e+00> : vector<8xf32>
      %190 = vector.multi_reduction <add>, %189, %cst_80 [1] : vector<8x128xf32> to vector<8xf32>
      %191 = vector.shape_cast %190 : vector<8xf32> to vector<8x1xf32>
      %cst_81 = arith.constant 1.280000e+02 : f32
      %192 = vector.broadcast %cst_81 : f32 to vector<8x1xf32>
      %193 = arith.divf %191, %192 : vector<8x1xf32>
      %194 = vector.broadcast %186 : vector<8x1xf32> to vector<8x128xf32>
      %195 = arith.subf %180, %194 : vector<8x128xf32>
      %cst_82 = arith.constant 9.99999974E-6 : f32
      %196 = vector.broadcast %cst_82 : f32 to vector<8x1xf32>
      %197 = arith.addf %193, %196 : vector<8x1xf32>
      %198 = math.rsqrt %197 : vector<8x1xf32>
      %199 = vector.broadcast %198 : vector<8x1xf32> to vector<8x128xf32>
      %200 = arith.mulf %195, %199 : vector<8x128xf32>
      %201 = vector.broadcast %181 : vector<1x128xf32> to vector<8x128xf32>
      %202 = arith.mulf %200, %201 : vector<8x128xf32>
      %203 = vector.broadcast %182 : vector<1x128xf32> to vector<8x128xf32>
      %204 = arith.addf %202, %203 : vector<8x128xf32>
      %c0_83 = arith.constant 0 : index
      %c0_84 = arith.constant 0 : index
      %205 = vector.load %arg23[%c0_83, %c0_84] : memref<8x128xf32, #tpu.memory_space<vmem>>, vector<8x128xf32>
      tpu.vector_store %arg23[%c0_83, %c0_84], %204 {strides = array<i32>} : memref<8x128xf32, #tpu.memory_space<vmem>>, vector<8x128xf32>,
    } else {
    }
    %c0 = arith.constant 0 : index
    %c0_1 = arith.constant 0 : index
    %3 = vector.load %arg23[%c0, %c0_1] : memref<8x128xf32, #tpu.memory_space<vmem>>, vector<8x128xf32>
    %c0_2 = arith.constant 0 : index
    %c0_3 = arith.constant 0 : index
    %c0_4 = arith.constant 0 : index
    %4 = vector.load %arg6[%c0_2, %c0_3, %c0_4] : memref<1x128x384xf32, #tpu.memory_space<vmem>>, vector<1x128x384xf32>
    %5 = vector.shape_cast %4 : vector<1x128x384xf32> to vector<128x384xf32>
    %cst = arith.constant dense<0.000000e+00> : vector<8x384xf32>
    %6 = tpu.matmul %3, %5, %cst {dimension_numbers = #tpu.dot_dimension_numbers<[1], [0], [0], [1], [0, 0, 1, 1], [], []>} : vector<8x128xf32>, vector<128x384xf32>, vector<8x384xf32> -> vector<8x384xf32>
    %c0_5 = arith.constant 0 : index
    %c0_6 = arith.constant 0 : index
    %c0_7 = arith.constant 0 : index
    %7 = vector.load %arg7[%c0_5, %c0_6, %c0_7] : memref<1x1x384xf32, #tpu.memory_space<vmem>>, vector<1x1x384xf32>
    %8 = vector.shape_cast %7 : vector<1x1x384xf32> to vector<1x384xf32>
    %9 = vector.broadcast %8 : vector<1x384xf32> to vector<8x384xf32>
    %10 = arith.addf %6, %9 : vector<8x384xf32>
    %11 = vector.extract_strided_slice %10 {offsets = [0, 0], sizes = [8, 128], strides = [1, 1]} : vector<8x384xf32> to vector<8x128xf32>
    %12 = vector.extract_strided_slice %10 {offsets = [0, 128], sizes = [8, 128], strides = [1, 1]} : vector<8x384xf32> to vector<8x128xf32>
    %13 = vector.extract_strided_slice %10 {offsets = [0, 256], sizes = [8, 128], strides = [1, 1]} : vector<8x384xf32> to vector<8x128xf32>
    %c0_8 = arith.constant 0 : index
    %c0_9 = arith.constant 0 : index
    %c0_10 = arith.constant 0 : index
    %14 = vector.load %arg3[%c0_8, %c0_9, %c0_10] : memref<1x1x8xf32, #tpu.memory_space<vmem>>, vector<1x1x8xf32>
    %15 = vector.shape_cast %14 : vector<1x1x8xf32> to vector<1x8xf32>
    %16 = tpu.iota {dimensions = array<i32: 1>} : vector<1x128xi32>
    %c0_i32_11 = arith.constant 0 : i32
    %17 = vector.broadcast %c0_i32_11 : i32 to vector<1x128xi32>
    %18 = arith.cmpi sge, %16, %17 : vector<1x128xi32>
    %c32_i32 = arith.constant 32 : i32
    %19 = vector.broadcast %c32_i32 : i32 to vector<1x128xi32>
    %20 = arith.cmpi slt, %16, %19 : vector<1x128xi32>
    %21 = arith.andi %18, %20 : vector<1x128xi1>
    %22 = arith.extui %21 : vector<1x128xi1> to vector<1x128xi32>
    %23 = arith.sitofp %22 : vector<1x128xi32> to vector<1x128xf32>
    %c32_i32_12 = arith.constant 32 : i32
    %24 = vector.broadcast %c32_i32_12 : i32 to vector<1x128xi32>
    %25 = arith.cmpi sge, %16, %24 : vector<1x128xi32>
    %c64_i32 = arith.constant 64 : i32
    %26 = vector.broadcast %c64_i32 : i32 to vector<1x128xi32>
    %27 = arith.cmpi slt, %16, %26 : vector<1x128xi32>
    %28 = arith.andi %25, %27 : vector<1x128xi1>
    %29 = arith.extui %28 : vector<1x128xi1> to vector<1x128xi32>
    %30 = arith.sitofp %29 : vector<1x128xi32> to vector<1x128xf32>
    %c64_i32_13 = arith.constant 64 : i32
    %31 = vector.broadcast %c64_i32_13 : i32 to vector<1x128xi32>
    %32 = arith.cmpi sge, %16, %31 : vector<1x128xi32>
    %c96_i32 = arith.constant 96 : i32
    %33 = vector.broadcast %c96_i32 : i32 to vector<1x128xi32>
    %34 = arith.cmpi slt, %16, %33 : vector<1x128xi32>
    %35 = arith.andi %32, %34 : vector<1x128xi1>
    %36 = arith.extui %35 : vector<1x128xi1> to vector<1x128xi32>
    %37 = arith.sitofp %36 : vector<1x128xi32> to vector<1x128xf32>
    %c96_i32_14 = arith.constant 96 : i32
    %38 = vector.broadcast %c96_i32_14 : i32 to vector<1x128xi32>
    %39 = arith.cmpi sge, %16, %38 : vector<1x128xi32>
    %c128_i32 = arith.constant 128 : i32
    %40 = vector.broadcast %c128_i32 : i32 to vector<1x128xi32>
    %41 = arith.cmpi slt, %16, %40 : vector<1x128xi32>
    %42 = arith.andi %39, %41 : vector<1x128xi1>
    %43 = arith.extui %42 : vector<1x128xi1> to vector<1x128xi32>
    %44 = arith.sitofp %43 : vector<1x128xi32> to vector<1x128xf32>
    %45 = vector.broadcast %23 : vector<1x128xf32> to vector<8x128xf32>
    %46 = arith.mulf %11, %45 : vector<8x128xf32>
    %47 = vector.broadcast %30 : vector<1x128xf32> to vector<8x128xf32>
    %48 = arith.mulf %11, %47 : vector<8x128xf32>
    %49 = vector.broadcast %37 : vector<1x128xf32> to vector<8x128xf32>
    %50 = arith.mulf %11, %49 : vector<8x128xf32>
    %51 = vector.broadcast %44 : vector<1x128xf32> to vector<8x128xf32>
    %52 = arith.mulf %11, %51 : vector<8x128xf32>
    %53 = tpu.concatenate %46, %48, %50, %52 in 0 : vector<8x128xf32>, vector<8x128xf32>, vector<8x128xf32>, vector<8x128xf32> -> vector<32x128xf32>
    %cst_15 = arith.constant dense<0.000000e+00> : vector<32x8xf32>
    %54 = tpu.matmul %53, %12, %cst_15 {dimension_numbers = #tpu.dot_dimension_numbers<[1], [1], [0], [0], [0, 0, 1, 0], [], []>} : vector<32x128xf32>, vector<8x128xf32>, vector<32x8xf32> -> vector<32x8xf32>
    %cst_16 = arith.constant 0.176776692 : f32
    %55 = vector.broadcast %cst_16 : f32 to vector<32x8xf32>
    %56 = arith.mulf %54, %55 : vector<32x8xf32>
    %57 = vector.broadcast %15 : vector<1x8xf32> to vector<32x8xf32>
    %58 = arith.addf %56, %57 : vector<32x8xf32>
    %cst_17 = arith.constant dense<0xFF800000> : vector<32xf32>
    %59 = vector.multi_reduction <maximumf>, %58, %cst_17 [1] : vector<32x8xf32> to vector<32xf32>
    %60 = vector.shape_cast %59 : vector<32xf32> to vector<32x1xf32>
    %61 = vector.broadcast %60 : vector<32x1xf32> to vector<32x8xf32>
    %62 = arith.subf %58, %61 : vector<32x8xf32>
    %63 = math.exp %62 : vector<32x8xf32>
    %cst_18 = arith.constant dense<0.000000e+00> : vector<32xf32>
    %64 = vector.multi_reduction <add>, %63, %cst_18 [1] : vector<32x8xf32> to vector<32xf32>
    %65 = vector.shape_cast %64 : vector<32xf32> to vector<32x1xf32>
    %66 = tpu.reciprocal %65 {approx = true} : vector<32x1xf32> -> vector<32x1xf32>
    %67 = vector.broadcast %66 : vector<32x1xf32> to vector<32x8xf32>
    %68 = arith.mulf %63, %67 : vector<32x8xf32>
    %cst_19 = arith.constant dense<0.000000e+00> : vector<32x128xf32>
    %69 = tpu.matmul %68, %13, %cst_19 {dimension_numbers = #tpu.dot_dimension_numbers<[1], [0], [0], [1], [0, 0, 1, 1], [], []>} : vector<32x8xf32>, vector<8x128xf32>, vector<32x128xf32> -> vector<32x128xf32>
    %cst_20 = arith.constant 0.000000e+00 : f32
    %70 = vector.broadcast %cst_20 : f32 to vector<8x128xf32>
    %71 = vector.extract_strided_slice %69 {offsets = [0, 0], sizes = [8, 128], strides = [1, 1]} : vector<32x128xf32> to vector<8x128xf32>
    %72 = vector.broadcast %23 : vector<1x128xf32> to vector<8x128xf32>
    %73 = arith.mulf %71, %72 : vector<8x128xf32>
    %74 = arith.addf %70, %73 : vector<8x128xf32>
    %75 = vector.extract_strided_slice %69 {offsets = [8, 0], sizes = [8, 128], strides = [1, 1]} : vector<32x128xf32> to vector<8x128xf32>
    %76 = vector.broadcast %30 : vector<1x128xf32> to vector<8x128xf32>
    %77 = arith.mulf %75, %76 : vector<8x128xf32>
    %78 = arith.addf %74, %77 : vector<8x128xf32>
    %79 = vector.extract_strided_slice %69 {offsets = [16, 0], sizes = [8, 128], strides = [1, 1]} : vector<32x128xf32> to vector<8x128xf32>
    %80 = vector.broadcast %37 : vector<1x128xf32> to vector<8x128xf32>
    %81 = arith.mulf %79, %80 : vector<8x128xf32>
    %82 = arith.addf %78, %81 : vector<8x128xf32>
    %83 = vector.extract_strided_slice %69 {offsets = [24, 0], sizes = [8, 128], strides = [1, 1]} : vector<32x128xf32> to vector<8x128xf32>
    %84 = vector.broadcast %44 : vector<1x128xf32> to vector<8x128xf32>
    %85 = arith.mulf %83, %84 : vector<8x128xf32>
    %86 = arith.addf %82, %85 : vector<8x128xf32>
    %c0_21 = arith.constant 0 : index
    %c0_22 = arith.constant 0 : index
    %c0_23 = arith.constant 0 : index
    %87 = vector.load %arg8[%c0_21, %c0_22, %c0_23] : memref<1x128x128xf32, #tpu.memory_space<vmem>>, vector<1x128x128xf32>
    %88 = vector.shape_cast %87 : vector<1x128x128xf32> to vector<128x128xf32>
    %cst_24 = arith.constant dense<0.000000e+00> : vector<8x128xf32>
    %89 = tpu.matmul %86, %88, %cst_24 {dimension_numbers = #tpu.dot_dimension_numbers<[1], [0], [0], [1], [0, 0, 1, 1], [], []>} : vector<8x128xf32>, vector<128x128xf32>, vector<8x128xf32> -> vector<8x128xf32>
    %c0_25 = arith.constant 0 : index
    %c0_26 = arith.constant 0 : index
    %c0_27 = arith.constant 0 : index
    %90 = vector.load %arg9[%c0_25, %c0_26, %c0_27] : memref<1x1x128xf32, #tpu.memory_space<vmem>>, vector<1x1x128xf32>
    %91 = vector.shape_cast %90 : vector<1x1x128xf32> to vector<1x128xf32>
    %92 = vector.broadcast %91 : vector<1x128xf32> to vector<8x128xf32>
    %93 = arith.addf %89, %92 : vector<8x128xf32>
    %94 = arith.addf %93, %3 : vector<8x128xf32>
    %c0_28 = arith.constant 0 : index
    %c0_29 = arith.constant 0 : index
    %c0_30 = arith.constant 0 : index
    %95 = vector.load %arg10[%c0_28, %c0_29, %c0_30] : memref<1x1x128xf32, #tpu.memory_space<vmem>>, vector<1x1x128xf32>
    %96 = vector.shape_cast %95 : vector<1x1x128xf32> to vector<1x128xf32>
    %c0_31 = arith.constant 0 : index
    %c0_32 = arith.constant 0 : index
    %c0_33 = arith.constant 0 : index
    %97 = vector.load %arg11[%c0_31, %c0_32, %c0_33] : memref<1x1x128xf32, #tpu.memory_space<vmem>>, vector<1x1x128xf32>
    %98 = vector.shape_cast %97 : vector<1x1x128xf32> to vector<1x128xf32>
    %cst_34 = arith.constant dense<0.000000e+00> : vector<8xf32>
    %99 = vector.multi_reduction <add>, %94, %cst_34 [1] : vector<8x128xf32> to vector<8xf32>
    %100 = vector.shape_cast %99 : vector<8xf32> to vector<8x1xf32>
    %cst_35 = arith.constant 1.280000e+02 : f32
    %101 = vector.broadcast %cst_35 : f32 to vector<8x1xf32>
    %102 = arith.divf %100, %101 : vector<8x1xf32>
    %103 = vector.broadcast %102 : vector<8x1xf32> to vector<8x128xf32>
    %104 = arith.subf %94, %103 : vector<8x128xf32>
    %105 = arith.mulf %104, %104 : vector<8x128xf32>
    %cst_36 = arith.constant dense<0.000000e+00> : vector<8xf32>
    %106 = vector.multi_reduction <add>, %105, %cst_36 [1] : vector<8x128xf32> to vector<8xf32>
    %107 = vector.shape_cast %106 : vector<8xf32> to vector<8x1xf32>
    %cst_37 = arith.constant 1.280000e+02 : f32
    %108 = vector.broadcast %cst_37 : f32 to vector<8x1xf32>
    %109 = arith.divf %107, %108 : vector<8x1xf32>
    %110 = vector.broadcast %102 : vector<8x1xf32> to vector<8x128xf32>
    %111 = arith.subf %94, %110 : vector<8x128xf32>
    %cst_38 = arith.constant 9.99999974E-6 : f32
    %112 = vector.broadcast %cst_38 : f32 to vector<8x1xf32>
    %113 = arith.addf %109, %112 : vector<8x1xf32>
    %114 = math.rsqrt %113 : vector<8x1xf32>
    %115 = vector.broadcast %114 : vector<8x1xf32> to vector<8x128xf32>
    %116 = arith.mulf %111, %115 : vector<8x128xf32>
    %117 = vector.broadcast %96 : vector<1x128xf32> to vector<8x128xf32>
    %118 = arith.mulf %116, %117 : vector<8x128xf32>
    %119 = vector.broadcast %98 : vector<1x128xf32> to vector<8x128xf32>
    %120 = arith.addf %118, %119 : vector<8x128xf32>
    %c0_39 = arith.constant 0 : index
    %c0_40 = arith.constant 0 : index
    %c0_41 = arith.constant 0 : index
    %121 = vector.load %arg12[%c0_39, %c0_40, %c0_41] : memref<1x128x256xf32, #tpu.memory_space<vmem>>, vector<1x128x256xf32>
    %122 = vector.shape_cast %121 : vector<1x128x256xf32> to vector<128x256xf32>
    %cst_42 = arith.constant dense<0.000000e+00> : vector<8x256xf32>
    %123 = tpu.matmul %120, %122, %cst_42 {dimension_numbers = #tpu.dot_dimension_numbers<[1], [0], [0], [1], [0, 0, 1, 1], [], []>} : vector<8x128xf32>, vector<128x256xf32>, vector<8x256xf32> -> vector<8x256xf32>
    %c0_43 = arith.constant 0 : index
    %c0_44 = arith.constant 0 : index
    %c0_45 = arith.constant 0 : index
    %124 = vector.load %arg13[%c0_43, %c0_44, %c0_45] : memref<1x1x256xf32, #tpu.memory_space<vmem>>, vector<1x1x256xf32>
    %125 = vector.shape_cast %124 : vector<1x1x256xf32> to vector<1x256xf32>
    %126 = vector.broadcast %125 : vector<1x256xf32> to vector<8x256xf32>
    %127 = arith.addf %123, %126 : vector<8x256xf32>
    %128 = arith.mulf %127, %127 : vector<8x256xf32>
    %129 = arith.mulf %127, %128 : vector<8x256xf32>
    %cst_46 = arith.constant 4.471500e-02 : f32
    %130 = vector.broadcast %cst_46 : f32 to vector<8x256xf32>
    %131 = arith.mulf %130, %129 : vector<8x256xf32>
    %132 = arith.addf %127, %131 : vector<8x256xf32>
    %cst_47 = arith.constant 0.797884583 : f32
    %133 = vector.broadcast %cst_47 : f32 to vector<8x256xf32>
    %134 = arith.mulf %133, %132 : vector<8x256xf32>
    %135 = math.tanh %134 : vector<8x256xf32>
    %cst_48 = arith.constant 1.000000e+00 : f32
    %136 = vector.broadcast %cst_48 : f32 to vector<8x256xf32>
    %137 = arith.addf %136, %135 : vector<8x256xf32>
    %cst_49 = arith.constant 5.000000e-01 : f32
    %138 = vector.broadcast %cst_49 : f32 to vector<8x256xf32>
    %139 = arith.mulf %138, %137 : vector<8x256xf32>
    %140 = arith.mulf %127, %139 : vector<8x256xf32>
    %c0_50 = arith.constant 0 : index
    %c0_51 = arith.constant 0 : index
    %c0_52 = arith.constant 0 : index
    %141 = vector.load %arg14[%c0_50, %c0_51, %c0_52] : memref<1x256x128xf32, #tpu.memory_space<vmem>>, vector<1x256x128xf32>
    %142 = vector.shape_cast %141 : vector<1x256x128xf32> to vector<256x128xf32>
    %cst_53 = arith.constant dense<0.000000e+00> : vector<8x128xf32>
    %143 = tpu.matmul %140, %142, %cst_53 {dimension_numbers = #tpu.dot_dimension_numbers<[1], [0], [0], [1], [0, 0, 1, 1], [], []>} : vector<8x256xf32>, vector<256x128xf32>, vector<8x128xf32> -> vector<8x128xf32>
    %c0_54 = arith.constant 0 : index
    %c0_55 = arith.constant 0 : index
    %c0_56 = arith.constant 0 : index
    %144 = vector.load %arg15[%c0_54, %c0_55, %c0_56] : memref<1x1x128xf32, #tpu.memory_space<vmem>>, vector<1x1x128xf32>
    %145 = vector.shape_cast %144 : vector<1x1x128xf32> to vector<1x128xf32>
    %146 = vector.broadcast %145 : vector<1x128xf32> to vector<8x128xf32>
    %147 = arith.addf %143, %146 : vector<8x128xf32>
    %148 = arith.addf %147, %120 : vector<8x128xf32>
    %c0_57 = arith.constant 0 : index
    %c0_58 = arith.constant 0 : index
    %c0_59 = arith.constant 0 : index
    %149 = vector.load %arg16[%c0_57, %c0_58, %c0_59] : memref<1x1x128xf32, #tpu.memory_space<vmem>>, vector<1x1x128xf32>
    %150 = vector.shape_cast %149 : vector<1x1x128xf32> to vector<1x128xf32>
    %c0_60 = arith.constant 0 : index
    %c0_61 = arith.constant 0 : index
    %c0_62 = arith.constant 0 : index
    %151 = vector.load %arg17[%c0_60, %c0_61, %c0_62] : memref<1x1x128xf32, #tpu.memory_space<vmem>>, vector<1x1x128xf32>
    %152 = vector.shape_cast %151 : vector<1x1x128xf32> to vector<1x128xf32>
    %cst_63 = arith.constant dense<0.000000e+00> : vector<8xf32>
    %153 = vector.multi_reduction <add>, %148, %cst_63 [1] : vector<8x128xf32> to vector<8xf32>
    %154 = vector.shape_cast %153 : vector<8xf32> to vector<8x1xf32>
    %cst_64 = arith.constant 1.280000e+02 : f32
    %155 = vector.broadcast %cst_64 : f32 to vector<8x1xf32>
    %156 = arith.divf %154, %155 : vector<8x1xf32>
    %157 = vector.broadcast %156 : vector<8x1xf32> to vector<8x128xf32>
    %158 = arith.subf %148, %157 : vector<8x128xf32>
    %159 = arith.mulf %158, %158 : vector<8x128xf32>
    %cst_65 = arith.constant dense<0.000000e+00> : vector<8xf32>
    %160 = vector.multi_reduction <add>, %159, %cst_65 [1] : vector<8x128xf32> to vector<8xf32>
    %161 = vector.shape_cast %160 : vector<8xf32> to vector<8x1xf32>
    %cst_66 = arith.constant 1.280000e+02 : f32
    %162 = vector.broadcast %cst_66 : f32 to vector<8x1xf32>
    %163 = arith.divf %161, %162 : vector<8x1xf32>
    %164 = vector.broadcast %156 : vector<8x1xf32> to vector<8x128xf32>
    %165 = arith.subf %148, %164 : vector<8x128xf32>
    %cst_67 = arith.constant 9.99999974E-6 : f32
    %166 = vector.broadcast %cst_67 : f32 to vector<8x1xf32>
    %167 = arith.addf %163, %166 : vector<8x1xf32>
    %168 = math.rsqrt %167 : vector<8x1xf32>
    %169 = vector.broadcast %168 : vector<8x1xf32> to vector<8x128xf32>
    %170 = arith.mulf %165, %169 : vector<8x128xf32>
    %171 = vector.broadcast %150 : vector<1x128xf32> to vector<8x128xf32>
    %172 = arith.mulf %170, %171 : vector<8x128xf32>
    %173 = vector.broadcast %152 : vector<1x128xf32> to vector<8x128xf32>
    %174 = arith.addf %172, %173 : vector<8x128xf32>
    %c0_68 = arith.constant 0 : index
    %c0_69 = arith.constant 0 : index
    %175 = vector.load %arg23[%c0_68, %c0_69] : memref<8x128xf32, #tpu.memory_space<vmem>>, vector<8x128xf32>
    tpu.vector_store %arg23[%c0_68, %c0_69], %174 {strides = array<i32>} : memref<8x128xf32, #tpu.memory_space<vmem>>, vector<8x128xf32>,
    %c1_i32 = arith.constant 1 : i32
    %176 = arith.cmpi eq, %arg1, %c1_i32 : i32
    %177 = arith.extui %176 : i1 to i32
    %c0_i32_70 = arith.constant 0 : i32
    %178 = arith.cmpi ne, %177, %c0_i32_70 : i32
    scf.if %178 {
      %179 = vector.extract_strided_slice %174 {offsets = [0, 0], sizes = [1, 128], strides = [1, 1]} : vector<8x128xf32> to vector<1x128xf32>
      %c0_71 = arith.constant 0 : index
      %c0_72 = arith.constant 0 : index
      %180 = vector.load %arg18[%c0_71, %c0_72] : memref<128x128xf32, #tpu.memory_space<vmem>>, vector<128x128xf32>
      %cst_73 = arith.constant dense<0.000000e+00> : vector<1x128xf32>
      %181 = tpu.matmul %179, %180, %cst_73 {dimension_numbers = #tpu.dot_dimension_numbers<[1], [0], [0], [1], [0, 0, 1, 1], [], []>} : vector<1x128xf32>, vector<128x128xf32>, vector<1x128xf32> -> vector<1x128xf32>
      %c0_74 = arith.constant 0 : index
      %c0_75 = arith.constant 0 : index
      %182 = vector.load %arg19[%c0_74, %c0_75] : memref<1x128xf32, #tpu.memory_space<vmem>>, vector<1x128xf32>
      %183 = arith.addf %181, %182 : vector<1x128xf32>
      %cst_76 = arith.constant 0.000000e+00 : f32
      %184 = vector.broadcast %cst_76 : f32 to vector<1x128xf32>
      %185 = arith.maximumf %183, %184 : vector<1x128xf32>
      %c0_77 = arith.constant 0 : index
      %c0_78 = arith.constant 0 : index
      %186 = vector.load %arg20[%c0_77, %c0_78] : memref<128x128xf32, #tpu.memory_space<vmem>>, vector<128x128xf32>
      %cst_79 = arith.constant dense<0.000000e+00> : vector<1x128xf32>
      %187 = tpu.matmul %185, %186, %cst_79 {dimension_numbers = #tpu.dot_dimension_numbers<[1], [0], [0], [1], [0, 0, 1, 1], [], []>} : vector<1x128xf32>, vector<128x128xf32>, vector<1x128xf32> -> vector<1x128xf32>
      %c0_80 = arith.constant 0 : index
      %c0_81 = arith.constant 0 : index
      %188 = vector.load %arg21[%c0_80, %c0_81] : memref<1x128xf32, #tpu.memory_space<vmem>>, vector<1x128xf32>
      %189 = arith.addf %187, %188 : vector<1x128xf32>
      %c0_82 = arith.constant 0 : index
      %c0_83 = arith.constant 0 : index
      %c0_84 = arith.constant 0 : index
      %190 = vector.load %arg22[%c0_82, %c0_83, %c0_84] : memref<1x1x128xf32, #tpu.memory_space<vmem>>, vector<1x1x128xf32>
      %191 = vector.shape_cast %190 : vector<1x1x128xf32> to vector<1x128xf32>
      %192 = vector.shape_cast %189 : vector<1x128xf32> to vector<1x1x128xf32>
      tpu.vector_store %arg22[%c0_82, %c0_83, %c0_84], %192 {strides = array<i32>} : memref<1x1x128xf32, #tpu.memory_space<vmem>>, vector<1x1x128xf32>,
    } else {
    }
    return
  }
  func.func @transform_0(%arg0: i32, %arg1: i32) -> (i32, i32, i32) {
    %c0_i32 = arith.constant 0 : i32
    %c0_i32_0 = arith.constant 0 : i32
    %c0_i32_1 = arith.constant 0 : i32
    return %arg0, %c0_i32, %c0_i32_0 : i32, i32, i32
  }
  func.func @transform_1(%arg0: i32, %arg1: i32) -> (i32, i32, i32) {
    %c0_i32 = arith.constant 0 : i32
    %c0_i32_0 = arith.constant 0 : i32
    %c0_i32_1 = arith.constant 0 : i32
    return %arg0, %c0_i32, %c0_i32_0 : i32, i32, i32
  }
  func.func @transform_2(%arg0: i32, %arg1: i32) -> (i32, i32) {
    %c0_i32 = arith.constant 0 : i32
    %c0_i32_0 = arith.constant 0 : i32
    %c0_i32_1 = arith.constant 0 : i32
    return %c0_i32, %c0_i32_0 : i32, i32
  }
  func.func @transform_3(%arg0: i32, %arg1: i32) -> (i32, i32) {
    %c0_i32 = arith.constant 0 : i32
    %c0_i32_0 = arith.constant 0 : i32
    %c0_i32_1 = arith.constant 0 : i32
    return %c0_i32, %c0_i32_0 : i32, i32
  }
  func.func @transform_4(%arg0: i32, %arg1: i32) -> (i32, i32, i32) {
    %c0_i32 = arith.constant 0 : i32
    %c0_i32_0 = arith.constant 0 : i32
    %c0_i32_1 = arith.constant 0 : i32
    return %arg1, %c0_i32, %c0_i32_0 : i32, i32, i32
  }
  func.func @transform_5(%arg0: i32, %arg1: i32) -> (i32, i32, i32) {
    %c0_i32 = arith.constant 0 : i32
    %c0_i32_0 = arith.constant 0 : i32
    %c0_i32_1 = arith.constant 0 : i32
    return %arg1, %c0_i32, %c0_i32_0 : i32, i32, i32
  }
  func.func @transform_6(%arg0: i32, %arg1: i32) -> (i32, i32, i32) {
    %c0_i32 = arith.constant 0 : i32
    %c0_i32_0 = arith.constant 0 : i32
    %c0_i32_1 = arith.constant 0 : i32
    return %arg1, %c0_i32, %c0_i32_0 : i32, i32, i32
  }
  func.func @transform_7(%arg0: i32, %arg1: i32) -> (i32, i32, i32) {
    %c0_i32 = arith.constant 0 : i32
    %c0_i32_0 = arith.constant 0 : i32
    %c0_i32_1 = arith.constant 0 : i32
    return %arg1, %c0_i32, %c0_i32_0 : i32, i32, i32
  }
  func.func @transform_8(%arg0: i32, %arg1: i32) -> (i32, i32, i32) {
    %c0_i32 = arith.constant 0 : i32
    %c0_i32_0 = arith.constant 0 : i32
    %c0_i32_1 = arith.constant 0 : i32
    return %arg1, %c0_i32, %c0_i32_0 : i32, i32, i32
  }
  func.func @transform_9(%arg0: i32, %arg1: i32) -> (i32, i32, i32) {
    %c0_i32 = arith.constant 0 : i32
    %c0_i32_0 = arith.constant 0 : i32
    %c0_i32_1 = arith.constant 0 : i32
    return %arg1, %c0_i32, %c0_i32_0 : i32, i32, i32
  }
  func.func @transform_10(%arg0: i32, %arg1: i32) -> (i32, i32, i32) {
    %c0_i32 = arith.constant 0 : i32
    %c0_i32_0 = arith.constant 0 : i32
    %c0_i32_1 = arith.constant 0 : i32
    return %arg1, %c0_i32, %c0_i32_0 : i32, i32, i32
  }
  func.func @transform_11(%arg0: i32, %arg1: i32) -> (i32, i32, i32) {
    %c0_i32 = arith.constant 0 : i32
    %c0_i32_0 = arith.constant 0 : i32
    %c0_i32_1 = arith.constant 0 : i32
    return %arg1, %c0_i32, %c0_i32_0 : i32, i32, i32
  }
  func.func @transform_12(%arg0: i32, %arg1: i32) -> (i32, i32, i32) {
    %c0_i32 = arith.constant 0 : i32
    %c0_i32_0 = arith.constant 0 : i32
    %c0_i32_1 = arith.constant 0 : i32
    return %arg1, %c0_i32, %c0_i32_0 : i32, i32, i32
  }
  func.func @transform_13(%arg0: i32, %arg1: i32) -> (i32, i32, i32) {
    %c0_i32 = arith.constant 0 : i32
    %c0_i32_0 = arith.constant 0 : i32
    %c0_i32_1 = arith.constant 0 : i32
    return %arg1, %c0_i32, %c0_i32_0 : i32, i32, i32
  }
  func.func @transform_14(%arg0: i32, %arg1: i32) -> (i32, i32, i32) {
    %c0_i32 = arith.constant 0 : i32
    %c0_i32_0 = arith.constant 0 : i32
    %c0_i32_1 = arith.constant 0 : i32
    return %arg1, %c0_i32, %c0_i32_0 : i32, i32, i32
  }
  func.func @transform_15(%arg0: i32, %arg1: i32) -> (i32, i32, i32) {
    %c0_i32 = arith.constant 0 : i32
    %c0_i32_0 = arith.constant 0 : i32
    %c0_i32_1 = arith.constant 0 : i32
    return %arg1, %c0_i32, %c0_i32_0 : i32, i32, i32
  }
  func.func @transform_16(%arg0: i32, %arg1: i32) -> (i32, i32) {
    %c0_i32 = arith.constant 0 : i32
    %c0_i32_0 = arith.constant 0 : i32
    %c0_i32_1 = arith.constant 0 : i32
    return %c0_i32, %c0_i32_0 : i32, i32
  }
  func.func @transform_17(%arg0: i32, %arg1: i32) -> (i32, i32) {
    %c0_i32 = arith.constant 0 : i32
    %c0_i32_0 = arith.constant 0 : i32
    %c0_i32_1 = arith.constant 0 : i32
    return %c0_i32, %c0_i32_0 : i32, i32
  }
  func.func @transform_18(%arg0: i32, %arg1: i32) -> (i32, i32) {
    %c0_i32 = arith.constant 0 : i32
    %c0_i32_0 = arith.constant 0 : i32
    %c0_i32_1 = arith.constant 0 : i32
    return %c0_i32, %c0_i32_0 : i32, i32
  }
  func.func @transform_19(%arg0: i32, %arg1: i32) -> (i32, i32) {
    %c0_i32 = arith.constant 0 : i32
    %c0_i32_0 = arith.constant 0 : i32
    %c0_i32_1 = arith.constant 0 : i32
    return %c0_i32, %c0_i32_0 : i32, i32
  }
  func.func @transform_20(%arg0: i32, %arg1: i32) -> (i32, i32, i32) {
    %c0_i32 = arith.constant 0 : i32
    %c0_i32_0 = arith.constant 0 : i32
    %c0_i32_1 = arith.constant 0 : i32
    return %arg0, %c0_i32, %c0_i32_0 : i32, i32, i32
  }
}

</mosaic_0001>

<llo_original>
// kernel: codebert_classifier_forward.1
$region0: #{codebert_classifier_forward.1}
  #allocation0 [shape = 'u32[]', space=smem, size = 0x4, offset = 0x4, fixed_abs, tag = 'smem constant byte address 0x4 - core index']
  #allocation1 [shape = 'u32[144,128]{1,0:T(1,128)}', space=vmem, size = 0x12000, scoped, tag = 'internal scratch']
  #allocation2 [shape = 'f32[8,128]{1,0:T(8,128)}', space=vmem, size = 0x1000, scoped, tag = 'scratch operand']
  %s0 = inlined_call_operand.vmem [shape: f32[2,8,128], index: 0, kind: input, shape index: {}]
  %s1 = inlined_call_operand.vmem [shape: f32[2,1,8], index: 1, kind: input, shape index: {}]
  %s2 = inlined_call_operand.vmem [shape: f32[1,128], index: 2, kind: input, shape index: {}]
  %s3 = inlined_call_operand.vmem [shape: f32[1,128], index: 3, kind: input, shape index: {}]
  %s4 = inlined_call_operand.vmem [shape: f32[2,128,384], index: 4, kind: input, shape index: {}]
  %s5 = inlined_call_operand.vmem [shape: f32[2,1,384], index: 5, kind: input, shape index: {}]
  %s6 = inlined_call_operand.hbm [shape: f32[2,128,128], index: 6, kind: input, shape index: {}]
  %s7 = inlined_call_operand.vmem [shape: f32[2,1,128], index: 7, kind: input, shape index: {}]
  %s8 = inlined_call_operand.vmem [shape: f32[2,1,128], index: 8, kind: input, shape index: {}]
  %s9 = inlined_call_operand.vmem [shape: f32[2,1,128], index: 9, kind: input, shape index: {}]
  %s10 = inlined_call_operand.hbm [shape: f32[2,128,256], index: 10, kind: input, shape index: {}]
  %s11 = inlined_call_operand.vmem [shape: f32[2,1,256], index: 11, kind: input, shape index: {}]
  %s12 = inlined_call_operand.hbm [shape: f32[2,256,128], index: 12, kind: input, shape index: {}]
  %s13 = inlined_call_operand.vmem [shape: f32[2,1,128], index: 13, kind: input, shape index: {}]
  %s14 = inlined_call_operand.vmem [shape: f32[2,1,128], index: 14, kind: input, shape index: {}]
  %s15 = inlined_call_operand.vmem [shape: f32[2,1,128], index: 15, kind: input, shape index: {}]
  %s16 = inlined_call_operand.vmem [shape: f32[128,128], index: 16, kind: input, shape index: {}]
  %s17 = inlined_call_operand.vmem [shape: f32[1,128], index: 17, kind: input, shape index: {}]
  %s18 = inlined_call_operand.vmem [shape: f32[128,128], index: 18, kind: input, shape index: {}]
  %s19 = inlined_call_operand.vmem [shape: f32[1,128], index: 19, kind: input, shape index: {}]
  %s20 = inlined_call_operand.hbm [shape: f32[2,1,128], index: 20, kind: output, shape index: {}]
  %s21 = sld [smem:[#allocation0]]
  $region133: #{codebert_classifier_forward.1} parent=0
    _
  %s23 = ssub.s32 1, %s21
  %s24 = scalar_select 0, %s23, %s21
  $region1: #{codebert_classifier_forward.1} parent=0
    #allocation3 [shape = 'u8[131072]{0}', space=vmem, size = 0x20000, scoped, tag = 'input window, operand 6']
    #allocation4 [shape = 's32[2]{0}', space=sflag, size = 0x8, scoped, tag = 'scoped memory for codebert_classifier_forward.1']
    #allocation5 [shape = 's32[2]{0}', space=sflag, size = 0x8, scoped, tag = 'scoped memory for codebert_classifier_forward.1']
    #allocation6 [shape = 'u8[262144]{0}', space=vmem, size = 0x40000, scoped, tag = 'input window, operand 10']
    #allocation7 [shape = 's32[2]{0}', space=sflag, size = 0x8, scoped, tag = 'scoped memory for codebert_classifier_forward.1']
    #allocation8 [shape = 'u8[262144]{0}', space=vmem, size = 0x40000, scoped, tag = 'input window, operand 12']
    #allocation9 [shape = 'u8[1024]{0}', space=vmem, size = 0x400, scoped, tag = 'output window, operand 0']
    %25 = vsyncpa [#allocation4], 0
    %s26 = scalar_lea.sflag [#allocation4], 1
    %27 = vsyncpa %s26, 0
    %28 = vsyncpa [#allocation7], 0
    %s29 = scalar_lea.sflag [#allocation7], 1
    %30 = vsyncpa %s29, 0
    %31 = vsyncpa [#allocation5], 0
    %s32 = scalar_lea.sflag [#allocation5], 1
    %33 = vsyncpa %s32, 0
    loop: start=0, step=1, limit=6
    $region2: #{codebert_classifier_forward.1} parent=1 // loop_pre_header
      _
    $region3: #{codebert_classifier_forward.1} parent=1 // loop_header
      %s35 = sphi 0, %s39
      %p36 = scmp.ge.s32.totalorder %s35, 6
      %s42 = sphi 0, %s54
      %s43 = sphi 0, %s50
      %s44 = sphi 0, %s42
      %s45 = sphi 0, %s43
      %s46 = sphi 0, %s44
      %s47 = sphi 0, %s45
      %s57 = sphi 0, %s59
      %s60 = sphi 0, %s57
      %s61 = sphi 0, %s60
      %s77 = sphi 0, %s61
      %s83 = sphi 0, %s85
      %s86 = sphi 0, %s83
      %s87 = sphi 0, %s86
      %s103 = sphi 0, %s87
      %s107 = sphi 0, %s107
      %s109 = sphi 0, %s107
      %s110 = sphi 0, %s109
      %s124 = sphi 0, %s110
      %s128 = sphi 0, %s128
      %s130 = sphi 0, %s128
      %s131 = sphi 0, %s130
      %s145 = sphi 0, %s131
      %s151 = sphi 0, %s153
      %s154 = sphi 0, %s151
      %s155 = sphi 0, %s154
      %s171 = sphi 0, %s155
      %s177 = sphi 0, %s179
      %s180 = sphi 0, %s177
      %s181 = sphi 0, %s180
      %s197 = sphi 0, %s181
      %s203 = sphi 0, %s205
      %s206 = sphi 0, %s203
      %s207 = sphi 0, %s206
      %s223 = sphi 0, %s207
      %s229 = sphi 0, %s231
      %s232 = sphi 0, %s229
      %s233 = sphi 0, %s232
      %s249 = sphi 0, %s233
      %s255 = sphi 0, %s257
      %s258 = sphi 0, %s255
      %s259 = sphi 0, %s258
      %s275 = sphi 0, %s259
      %s281 = sphi 0, %s283
      %s284 = sphi 0, %s281
      %s285 = sphi 0, %s284
      %s301 = sphi 0, %s285
      %s307 = sphi 0, %s309
      %s310 = sphi 0, %s307
      %s311 = sphi 0, %s310
      %s327 = sphi 0, %s311
      %s333 = sphi 0, %s335
      %s336 = sphi 0, %s333
      %s337 = sphi 0, %s336
      %s353 = sphi 0, %s337
      %s359 = sphi 0, %s361
      %s362 = sphi 0, %s359
      %s363 = sphi 0, %s362
      %s379 = sphi 0, %s363
      %s385 = sphi 0, %s387
      %s388 = sphi 0, %s385
      %s389 = sphi 0, %s388
      %s405 = sphi 0, %s389
      %s411 = sphi 0, %s413
      %s414 = sphi 0, %s411
      %s415 = sphi 0, %s414
      %s431 = sphi 0, %s415
      %s437 = sphi 0, %s439
      %s440 = sphi 0, %s437
      %s441 = sphi 0, %s440
      %s457 = sphi 0, %s441
      %s461 = sphi 0, %s461
      %s463 = sphi 0, %s461
      %s464 = sphi 0, %s463
      %s478 = sphi 0, %s464
      %s482 = sphi 0, %s482
      %s484 = sphi 0, %s482
      %s485 = sphi 0, %s484
      %s499 = sphi 0, %s485
      %s503 = sphi 0, %s503
      %s505 = sphi 0, %s503
      %s506 = sphi 0, %s505
      %s520 = sphi 0, %s506
      %s524 = sphi 0, %s524
      %s526 = sphi 0, %s524
      %s527 = sphi 0, %s526
      %s541 = sphi 0, %s527
      %s547 = sphi 0, %s549
      %s550 = sphi 0, %s547
      %s551 = sphi 0, %s550
      %s567 = sphi 0, %s551
    $region4: #{codebert_classifier_forward.1} parent=1 // loop_header_branch
      %38 = sbr.rel (%p36) target = $region8
    $region5: #{codebert_classifier_forward.1} parent=1 // loop_body
      %s40 = ssub.s32 %s35, 1
      %s41 = ssub.s32 %s35, 2
      %s48 = sadd.s32 1, %s43
      %p49 = scmp.ge.s32.totalorder %s48, 2
      %s50 = scalar_select %p49, 0, %s48
      %s51 = sadd.s32 1, %s42
      %s52 = scalar_select %p49, %s51, %s42
      %p53 = scmp.ge.s32.totalorder %s52, 2
      %s54 = scalar_select %p53, 0, %s52
      %s55 = ssub.s32 %s42, %s54
      %p56 = scmp.eq.s32.totalorder %s55, 0
      %s58 = sadd.s32 %s57, 1
      %s59 = scalar_select %p56, %s57, %s58
      %p62 = pneg %p56
      %p63 = scmp.eq.s32.totalorder %s35, 3
      %p64 = por %p62, %p63
      %p65 = scmp.ne.s32.totalorder %s57, %s60
      %p66 = scmp.eq.s32.totalorder %s35, 0
      %p67 = por %p65, %p66
      %p68 = scmp.ne.s32.totalorder %s57, %s60
      %p69 = scmp.eq.s32.totalorder %s40, 3
      %p70 = por %p68, %p69
      %p71 = scmp.ne.s32.totalorder %s60, %s61
      %p72 = scmp.eq.s32.totalorder %s40, 0
      %p73 = por %p71, %p72
      %p74 = scmp.ne.s32.totalorder %s60, %s61
      %p75 = scmp.eq.s32.totalorder %s41, 3
      %p76 = por %p74, %p75
      %p78 = scmp.ne.s32.totalorder %s61, %s77
      %p79 = scmp.eq.s32.totalorder %s41, 0
      %p80 = por %p78, %p79
      %s81 = ssub.s32 %s42, %s54
      %p82 = scmp.eq.s32.totalorder %s81, 0
      %s84 = sadd.s32 %s83, 1
      %s85 = scalar_select %p82, %s83, %s84
      %p88 = pneg %p82
      %p89 = scmp.eq.s32.totalorder %s35, 3
      %p90 = por %p88, %p89
      %p91 = scmp.ne.s32.totalorder %s83, %s86
      %p92 = scmp.eq.s32.totalorder %s35, 0
      %p93 = por %p91, %p92
      %p94 = scmp.ne.s32.totalorder %s83, %s86
      %p95 = scmp.eq.s32.totalorder %s40, 3
      %p96 = por %p94, %p95
      %p97 = scmp.ne.s32.totalorder %s86, %s87
      %p98 = scmp.eq.s32.totalorder %s40, 0
      %p99 = por %p97, %p98
      %p100 = scmp.ne.s32.totalorder %s86, %s87
      %p101 = scmp.eq.s32.totalorder %s41, 3
      %p102 = por %p100, %p101
      %p104 = scmp.ne.s32.totalorder %s87, %s103
      %p105 = scmp.eq.s32.totalorder %s41, 0
      %p106 = por %p104, %p105
      %s108 = sadd.s32 %s107, 1
      %p111 = scmp.eq.s32.totalorder %s35, 3
      %p112 = scmp.ne.s32.totalorder %s107, %s109
      %p113 = scmp.eq.s32.totalorder %s35, 0
      %p114 = por %p112, %p113
      %p115 = scmp.ne.s32.totalorder %s107, %s109
      %p116 = scmp.eq.s32.totalorder %s40, 3
      %p117 = por %p115, %p116
      %p118 = scmp.ne.s32.totalorder %s109, %s110
      %p119 = scmp.eq.s32.totalorder %s40, 0
      %p120 = por %p118, %p119
      %p121 = scmp.ne.s32.totalorder %s109, %s110
      %p122 = scmp.eq.s32.totalorder %s41, 3
      %p123 = por %p121, %p122
      %p125 = scmp.ne.s32.totalorder %s110, %s124
      %p126 = scmp.eq.s32.totalorder %s41, 0
      %p127 = por %p125, %p126
      %s129 = sadd.s32 %s128, 1
      %p132 = scmp.eq.s32.totalorder %s35, 3
      %p133 = scmp.ne.s32.totalorder %s128, %s130
      %p134 = scmp.eq.s32.totalorder %s35, 0
      %p135 = por %p133, %p134
      %p136 = scmp.ne.s32.totalorder %s128, %s130
      %p137 = scmp.eq.s32.totalorder %s40, 3
      %p138 = por %p136, %p137
      %p139 = scmp.ne.s32.totalorder %s130, %s131
      %p140 = scmp.eq.s32.totalorder %s40, 0
      %p141 = por %p139, %p140
      %p142 = scmp.ne.s32.totalorder %s130, %s131
      %p143 = scmp.eq.s32.totalorder %s41, 3
      %p144 = por %p142, %p143
      %p146 = scmp.ne.s32.totalorder %s131, %s145
      %p147 = scmp.eq.s32.totalorder %s41, 0
      %p148 = por %p146, %p147
      %s149 = ssub.s32 %s43, %s50
      %p150 = scmp.eq.s32.totalorder %s149, 0
      %s152 = sadd.s32 %s151, 1
      %s153 = scalar_select %p150, %s151, %s152
      %p156 = pneg %p150
      %p157 = scmp.eq.s32.totalorder %s35, 3
      %p158 = por %p156, %p157
      %p159 = scmp.ne.s32.totalorder %s151, %s154
      %p160 = scmp.eq.s32.totalorder %s35, 0
      %p161 = por %p159, %p160
      %p162 = scmp.ne.s32.totalorder %s151, %s154
      %p163 = scmp.eq.s32.totalorder %s40, 3
      %p164 = por %p162, %p163
      %p165 = scmp.ne.s32.totalorder %s154, %s155
      %p166 = scmp.eq.s32.totalorder %s40, 0
      %p167 = por %p165, %p166
      %p168 = scmp.ne.s32.totalorder %s154, %s155
      %p169 = scmp.eq.s32.totalorder %s41, 3
      %p170 = por %p168, %p169
      %p172 = scmp.ne.s32.totalorder %s155, %s171
      %p173 = scmp.eq.s32.totalorder %s41, 0
      %p174 = por %p172, %p173
      %s175 = ssub.s32 %s43, %s50
      %p176 = scmp.eq.s32.totalorder %s175, 0
      %s178 = sadd.s32 %s177, 1
      %s179 = scalar_select %p176, %s177, %s178
      %p182 = pneg %p176
      %p183 = scmp.eq.s32.totalorder %s35, 3
      %p184 = por %p182, %p183
      %p185 = scmp.ne.s32.totalorder %s177, %s180
      %p186 = scmp.eq.s32.totalorder %s35, 0
      %p187 = por %p185, %p186
      %p188 = scmp.ne.s32.totalorder %s177, %s180
      %p189 = scmp.eq.s32.totalorder %s40, 3
      %p190 = por %p188, %p189
      %p191 = scmp.ne.s32.totalorder %s180, %s181
      %p192 = scmp.eq.s32.totalorder %s40, 0
      %p193 = por %p191, %p192
      %p194 = scmp.ne.s32.totalorder %s180, %s181
      %p195 = scmp.eq.s32.totalorder %s41, 3
      %p196 = por %p194, %p195
      %p198 = scmp.ne.s32.totalorder %s181, %s197
      %p199 = scmp.eq.s32.totalorder %s41, 0
      %p200 = por %p198, %p199
      %s201 = ssub.s32 %s43, %s50
      %p202 = scmp.eq.s32.totalorder %s201, 0
      %s204 = sadd.s32 %s203, 1
      %s205 = scalar_select %p202, %s203, %s204
      %p208 = pneg %p202
      %p209 = scmp.eq.s32.totalorder %s35, 3
      %p210 = por %p208, %p209
      %p211 = scmp.ne.s32.totalorder %s203, %s206
      %p212 = scmp.eq.s32.totalorder %s35, 0
      %p213 = por %p211, %p212
      %p214 = scmp.ne.s32.totalorder %s203, %s206
      %p215 = scmp.eq.s32.totalorder %s40, 3
      %p216 = por %p214, %p215
      %p217 = scmp.ne.s32.totalorder %s206, %s207
      %p218 = scmp.eq.s32.totalorder %s40, 0
      %p219 = por %p217, %p218
      %p220 = scmp.ne.s32.totalorder %s206, %s207
      %p221 = scmp.eq.s32.totalorder %s41, 3
      %p222 = por %p220, %p221
      %p224 = scmp.ne.s32.totalorder %s207, %s223
      %p225 = scmp.eq.s32.totalorder %s41, 0
      %p226 = por %p224, %p225
      %s227 = ssub.s32 %s43, %s50
      %p228 = scmp.eq.s32.totalorder %s227, 0
      %s230 = sadd.s32 %s229, 1
      %s231 = scalar_select %p228, %s229, %s230
      %p234 = pneg %p228
      %p235 = scmp.eq.s32.totalorder %s35, 3
      %p236 = por %p234, %p235
      %p237 = scmp.ne.s32.totalorder %s229, %s232
      %p238 = scmp.eq.s32.totalorder %s35, 0
      %p239 = por %p237, %p238
      %p240 = scmp.ne.s32.totalorder %s229, %s232
      %p241 = scmp.eq.s32.totalorder %s40, 3
      %p242 = por %p240, %p241
      %p243 = scmp.ne.s32.totalorder %s232, %s233
      %p244 = scmp.eq.s32.totalorder %s40, 0
      %p245 = por %p243, %p244
      %p246 = scmp.ne.s32.totalorder %s232, %s233
      %p247 = scmp.eq.s32.totalorder %s41, 3
      %p248 = por %p246, %p247
      %p250 = scmp.ne.s32.totalorder %s233, %s249
      %p251 = scmp.eq.s32.totalorder %s41, 0
      %p252 = por %p250, %p251
      %s253 = ssub.s32 %s43, %s50
      %p254 = scmp.eq.s32.totalorder %s253, 0
      %s256 = sadd.s32 %s255, 1
      %s257 = scalar_select %p254, %s255, %s256
      %p260 = pneg %p254
      %p261 = scmp.eq.s32.totalorder %s35, 3
      %p262 = por %p260, %p261
      %p263 = scmp.ne.s32.totalorder %s255, %s258
      %p264 = scmp.eq.s32.totalorder %s35, 0
      %p265 = por %p263, %p264
      %p266 = scmp.ne.s32.totalorder %s255, %s258
      %p267 = scmp.eq.s32.totalorder %s40, 3
      %p268 = por %p266, %p267
      %p269 = scmp.ne.s32.totalorder %s258, %s259
      %p270 = scmp.eq.s32.totalorder %s40, 0
      %p271 = por %p269, %p270
      %p272 = scmp.ne.s32.totalorder %s258, %s259
      %p273 = scmp.eq.s32.totalorder %s41, 3
      %p274 = por %p272, %p273
      %p276 = scmp.ne.s32.totalorder %s259, %s275
      %p277 = scmp.eq.s32.totalorder %s41, 0
      %p278 = por %p276, %p277
      %s279 = ssub.s32 %s43, %s50
      %p280 = scmp.eq.s32.totalorder %s279, 0
      %s282 = sadd.s32 %s281, 1
      %s283 = scalar_select %p280, %s281, %s282
      %p286 = pneg %p280
      %p287 = scmp.eq.s32.totalorder %s35, 3
      %p288 = por %p286, %p287
      %p289 = scmp.ne.s32.totalorder %s281, %s284
      %p290 = scmp.eq.s32.totalorder %s35, 0
      %p291 = por %p289, %p290
      %p292 = scmp.ne.s32.totalorder %s281, %s284
      %p293 = scmp.eq.s32.totalorder %s40, 3
      %p294 = por %p292, %p293
      %p295 = scmp.ne.s32.totalorder %s284, %s285
      %p296 = scmp.eq.s32.totalorder %s40, 0
      %p297 = por %p295, %p296
      %p298 = scmp.ne.s32.totalorder %s284, %s285
      %p299 = scmp.eq.s32.totalorder %s41, 3
      %p300 = por %p298, %p299
      %p302 = scmp.ne.s32.totalorder %s285, %s301
      %p303 = scmp.eq.s32.totalorder %s41, 0
      %p304 = por %p302, %p303
      %s305 = ssub.s32 %s43, %s50
      %p306 = scmp.eq.s32.totalorder %s305, 0
      %s308 = sadd.s32 %s307, 1
      %s309 = scalar_select %p306, %s307, %s308
      %p312 = pneg %p306
      %p313 = scmp.eq.s32.totalorder %s35, 3
      %p314 = por %p312, %p313
      %p315 = scmp.ne.s32.totalorder %s307, %s310
      %p316 = scmp.eq.s32.totalorder %s35, 0
      %p317 = por %p315, %p316
      %p318 = scmp.ne.s32.totalorder %s307, %s310
      %p319 = scmp.eq.s32.totalorder %s40, 3
      %p320 = por %p318, %p319
      %p321 = scmp.ne.s32.totalorder %s310, %s311
      %p322 = scmp.eq.s32.totalorder %s40, 0
      %p323 = por %p321, %p322
      %p324 = scmp.ne.s32.totalorder %s310, %s311
      %p325 = scmp.eq.s32.totalorder %s41, 3
      %p326 = por %p324, %p325
      %p328 = scmp.ne.s32.totalorder %s311, %s327
      %p329 = scmp.eq.s32.totalorder %s41, 0
      %p330 = por %p328, %p329
      %s331 = ssub.s32 %s43, %s50
      %p332 = scmp.eq.s32.totalorder %s331, 0
      %s334 = sadd.s32 %s333, 1
      %s335 = scalar_select %p332, %s333, %s334
      %p338 = pneg %p332
      %p339 = scmp.eq.s32.totalorder %s35, 3
      %p340 = por %p338, %p339
      %p341 = scmp.ne.s32.totalorder %s333, %s336
      %p342 = scmp.eq.s32.totalorder %s35, 0
      %p343 = por %p341, %p342
      %p344 = scmp.ne.s32.totalorder %s333, %s336
      %p345 = scmp.eq.s32.totalorder %s40, 3
      %p346 = por %p344, %p345
      %p347 = scmp.ne.s32.totalorder %s336, %s337
      %p348 = scmp.eq.s32.totalorder %s40, 0
      %p349 = por %p347, %p348
      %p350 = scmp.ne.s32.totalorder %s336, %s337
      %p351 = scmp.eq.s32.totalorder %s41, 3
      %p352 = por %p350, %p351
      %p354 = scmp.ne.s32.totalorder %s337, %s353
      %p355 = scmp.eq.s32.totalorder %s41, 0
      %p356 = por %p354, %p355
      %s357 = ssub.s32 %s43, %s50
      %p358 = scmp.eq.s32.totalorder %s357, 0
      %s360 = sadd.s32 %s359, 1
      %s361 = scalar_select %p358, %s359, %s360
      %p364 = pneg %p358
      %p365 = scmp.eq.s32.totalorder %s35, 3
      %p366 = por %p364, %p365
      %p367 = scmp.ne.s32.totalorder %s359, %s362
      %p368 = scmp.eq.s32.totalorder %s35, 0
      %p369 = por %p367, %p368
      %p370 = scmp.ne.s32.totalorder %s359, %s362
      %p371 = scmp.eq.s32.totalorder %s40, 3
      %p372 = por %p370, %p371
      %p373 = scmp.ne.s32.totalorder %s362, %s363
      %p374 = scmp.eq.s32.totalorder %s40, 0
      %p375 = por %p373, %p374
      %p376 = scmp.ne.s32.totalorder %s362, %s363
      %p377 = scmp.eq.s32.totalorder %s41, 3
      %p378 = por %p376, %p377
      %p380 = scmp.ne.s32.totalorder %s363, %s379
      %p381 = scmp.eq.s32.totalorder %s41, 0
      %p382 = por %p380, %p381
      %s383 = ssub.s32 %s43, %s50
      %p384 = scmp.eq.s32.totalorder %s383, 0
      %s386 = sadd.s32 %s385, 1
      %s387 = scalar_select %p384, %s385, %s386
      %p390 = pneg %p384
      %p391 = scmp.eq.s32.totalorder %s35, 3
      %p392 = por %p390, %p391
      %p393 = scmp.ne.s32.totalorder %s385, %s388
      %p394 = scmp.eq.s32.totalorder %s35, 0
      %p395 = por %p393, %p394
      %p396 = scmp.ne.s32.totalorder %s385, %s388
      %p397 = scmp.eq.s32.totalorder %s40, 3
      %p398 = por %p396, %p397
      %p399 = scmp.ne.s32.totalorder %s388, %s389
      %p400 = scmp.eq.s32.totalorder %s40, 0
      %p401 = por %p399, %p400
      %p402 = scmp.ne.s32.totalorder %s388, %s389
      %p403 = scmp.eq.s32.totalorder %s41, 3
      %p404 = por %p402, %p403
      %p406 = scmp.ne.s32.totalorder %s389, %s405
      %p407 = scmp.eq.s32.totalorder %s41, 0
      %p408 = por %p406, %p407
      %s409 = ssub.s32 %s43, %s50
      %p410 = scmp.eq.s32.totalorder %s409, 0
      %s412 = sadd.s32 %s411, 1
      %s413 = scalar_select %p410, %s411, %s412
      %p416 = pneg %p410
      %p417 = scmp.eq.s32.totalorder %s35, 3
      %p418 = por %p416, %p417
      %p419 = scmp.ne.s32.totalorder %s411, %s414
      %p420 = scmp.eq.s32.totalorder %s35, 0
      %p421 = por %p419, %p420
      %p422 = scmp.ne.s32.totalorder %s411, %s414
      %p423 = scmp.eq.s32.totalorder %s40, 3
      %p424 = por %p422, %p423
      %p425 = scmp.ne.s32.totalorder %s414, %s415
      %p426 = scmp.eq.s32.totalorder %s40, 0
      %p427 = por %p425, %p426
      %p428 = scmp.ne.s32.totalorder %s414, %s415
      %p429 = scmp.eq.s32.totalorder %s41, 3
      %p430 = por %p428, %p429
      %p432 = scmp.ne.s32.totalorder %s415, %s431
      %p433 = scmp.eq.s32.totalorder %s41, 0
      %p434 = por %p432, %p433
      %s435 = ssub.s32 %s43, %s50
      %p436 = scmp.eq.s32.totalorder %s435, 0
      %s438 = sadd.s32 %s437, 1
      %s439 = scalar_select %p436, %s437, %s438
      %p442 = pneg %p436
      %p443 = scmp.eq.s32.totalorder %s35, 3
      %p444 = por %p442, %p443
      %p445 = scmp.ne.s32.totalorder %s437, %s440
      %p446 = scmp.eq.s32.totalorder %s35, 0
      %p447 = por %p445, %p446
      %p448 = scmp.ne.s32.totalorder %s437, %s440
      %p449 = scmp.eq.s32.totalorder %s40, 3
      %p450 = por %p448, %p449
      %p451 = scmp.ne.s32.totalorder %s440, %s441
      %p452 = scmp.eq.s32.totalorder %s40, 0
      %p453 = por %p451, %p452
      %p454 = scmp.ne.s32.totalorder %s440, %s441
      %p455 = scmp.eq.s32.totalorder %s41, 3
      %p456 = por %p454, %p455
      %p458 = scmp.ne.s32.totalorder %s441, %s457
      %p459 = scmp.eq.s32.totalorder %s41, 0
      %p460 = por %p458, %p459
      %s462 = sadd.s32 %s461, 1
      %p465 = scmp.eq.s32.totalorder %s35, 3
      %p466 = scmp.ne.s32.totalorder %s461, %s463
      %p467 = scmp.eq.s32.totalorder %s35, 0
      %p468 = por %p466, %p467
      %p469 = scmp.ne.s32.totalorder %s461, %s463
      %p470 = scmp.eq.s32.totalorder %s40, 3
      %p471 = por %p469, %p470
      %p472 = scmp.ne.s32.totalorder %s463, %s464
      %p473 = scmp.eq.s32.totalorder %s40, 0
      %p474 = por %p472, %p473
      %p475 = scmp.ne.s32.totalorder %s463, %s464
      %p476 = scmp.eq.s32.totalorder %s41, 3
      %p477 = por %p475, %p476
      %p479 = scmp.ne.s32.totalorder %s464, %s478
      %p480 = scmp.eq.s32.totalorder %s41, 0
      %p481 = por %p479, %p480
      %s483 = sadd.s32 %s482, 1
      %p486 = scmp.eq.s32.totalorder %s35, 3
      %p487 = scmp.ne.s32.totalorder %s482, %s484
      %p488 = scmp.eq.s32.totalorder %s35, 0
      %p489 = por %p487, %p488
      %p490 = scmp.ne.s32.totalorder %s482, %s484
      %p491 = scmp.eq.s32.totalorder %s40, 3
      %p492 = por %p490, %p491
      %p493 = scmp.ne.s32.totalorder %s484, %s485
      %p494 = scmp.eq.s32.totalorder %s40, 0
      %p495 = por %p493, %p494
      %p496 = scmp.ne.s32.totalorder %s484, %s485
      %p497 = scmp.eq.s32.totalorder %s41, 3
      %p498 = por %p496, %p497
      %p500 = scmp.ne.s32.totalorder %s485, %s499
      %p501 = scmp.eq.s32.totalorder %s41, 0
      %p502 = por %p500, %p501
      %s504 = sadd.s32 %s503, 1
      %p507 = scmp.eq.s32.totalorder %s35, 3
      %p508 = scmp.ne.s32.totalorder %s503, %s505
      %p509 = scmp.eq.s32.totalorder %s35, 0
      %p510 = por %p508, %p509
      %p511 = scmp.ne.s32.totalorder %s503, %s505
      %p512 = scmp.eq.s32.totalorder %s40, 3
      %p513 = por %p511, %p512
      %p514 = scmp.ne.s32.totalorder %s505, %s506
      %p515 = scmp.eq.s32.totalorder %s40, 0
      %p516 = por %p514, %p515
      %p517 = scmp.ne.s32.totalorder %s505, %s506
      %p518 = scmp.eq.s32.totalorder %s41, 3
      %p519 = por %p517, %p518
      %p521 = scmp.ne.s32.totalorder %s506, %s520
      %p522 = scmp.eq.s32.totalorder %s41, 0
      %p523 = por %p521, %p522
      %s525 = sadd.s32 %s524, 1
      %p528 = scmp.eq.s32.totalorder %s35, 3
      %p529 = scmp.ne.s32.totalorder %s524, %s526
      %p530 = scmp.eq.s32.totalorder %s35, 0
      %p531 = por %p529, %p530
      %p532 = scmp.ne.s32.totalorder %s524, %s526
      %p533 = scmp.eq.s32.totalorder %s40, 3
      %p534 = por %p532, %p533
      %p535 = scmp.ne.s32.totalorder %s526, %s527
      %p536 = scmp.eq.s32.totalorder %s40, 0
      %p537 = por %p535, %p536
      %p538 = scmp.ne.s32.totalorder %s526, %s527
      %p539 = scmp.eq.s32.totalorder %s41, 3
      %p540 = por %p538, %p539
      %p542 = scmp.ne.s32.totalorder %s527, %s541
      %p543 = scmp.eq.s32.totalorder %s41, 0
      %p544 = por %p542, %p543
      %s545 = ssub.s32 %s42, %s54
      %p546 = scmp.eq.s32.totalorder %s545, 0
      %s548 = sadd.s32 %s547, 1
      %s549 = scalar_select %p546, %s547, %s548
      %p552 = pneg %p546
      %p553 = scmp.eq.s32.totalorder %s35, 3
      %p554 = por %p552, %p553
      %p555 = scmp.ne.s32.totalorder %s547, %s550
      %p556 = scmp.eq.s32.totalorder %s35, 0
      %p557 = por %p555, %p556
      %p558 = scmp.ne.s32.totalorder %s547, %s550
      %p559 = scmp.eq.s32.totalorder %s40, 3
      %p560 = por %p558, %p559
      %p561 = scmp.ne.s32.totalorder %s550, %s551
      %p562 = scmp.eq.s32.totalorder %s40, 0
      %p563 = por %p561, %p562
      %p564 = scmp.ne.s32.totalorder %s550, %s551
      %p565 = scmp.eq.s32.totalorder %s41, 3
      %p566 = por %p564, %p565
      %p568 = scmp.ne.s32.totalorder %s551, %s567
      %p569 = scmp.eq.s32.totalorder %s41, 0
      %p570 = por %p568, %p569
      %p571 = scmp.le.s32.totalorder 1, %s35
      %p572 = scmp.lt.s32.totalorder %s35, 5
      %p573 = pnand %p571, %p572
      %p574 = pneg %p573
      // Predicated region
      $region9: #{codebert_classifier_forward.1} parent=5 // pred_check
        _
      $region10: #{codebert_classifier_forward.1} parent=5 // pred_check_branch
        %576 = sbr.rel (%p573) target = $region12
      $region11: #{codebert_classifier_forward.1} parent=5 // pred_region
        %s577 = ssub.s32 %s35, 1
        // Predicated region
        $region13: #{codebert_classifier_forward.1} parent=11 // pred_check
          %p578 = pneg %p120
        $region14: #{codebert_classifier_forward.1} parent=11 // pred_check_branch
          %580 = sbr.rel (%p578) target = $region16
        $region15: #{codebert_classifier_forward.1} parent=11 // pred_region
          _
        $region16: #{codebert_classifier_forward.1} parent=11 // pred_fallthru
          _
        // Predicated region
        $region17: #{codebert_classifier_forward.1} parent=11 // pred_check
          %p581 = pneg %p141
        $region18: #{codebert_classifier_forward.1} parent=11 // pred_check_branch
          %583 = sbr.rel (%p581) target = $region20
        $region19: #{codebert_classifier_forward.1} parent=11 // pred_region
          _
        $region20: #{codebert_classifier_forward.1} parent=11 // pred_fallthru
          _
        // Predicated region
        $region21: #{codebert_classifier_forward.1} parent=11 // pred_check
          %p584 = pneg %p474
        $region22: #{codebert_classifier_forward.1} parent=11 // pred_check_branch
          %586 = sbr.rel (%p584) target = $region24
        $region23: #{codebert_classifier_forward.1} parent=11 // pred_region
          _
        $region24: #{codebert_classifier_forward.1} parent=11 // pred_fallthru
          _
        // Predicated region
        $region25: #{codebert_classifier_forward.1} parent=11 // pred_check
          %p587 = pneg %p495
        $region26: #{codebert_classifier_forward.1} parent=11 // pred_check_branch
          %589 = sbr.rel (%p587) target = $region28
        $region27: #{codebert_classifier_forward.1} parent=11 // pred_region
          _
        $region28: #{codebert_classifier_forward.1} parent=11 // pred_fallthru
          _
        // Predicated region
        $region29: #{codebert_classifier_forward.1} parent=11 // pred_check
          %p590 = pneg %p516
        $region30: #{codebert_classifier_forward.1} parent=11 // pred_check_branch
          %592 = sbr.rel (%p590) target = $region32
        $region31: #{codebert_classifier_forward.1} parent=11 // pred_region
          _
        $region32: #{codebert_classifier_forward.1} parent=11 // pred_fallthru
          _
        // Predicated region
        $region33: #{codebert_classifier_forward.1} parent=11 // pred_check
          %p593 = pneg %p537
        $region34: #{codebert_classifier_forward.1} parent=11 // pred_check_branch
          %595 = sbr.rel (%p593) target = $region36
        $region35: #{codebert_classifier_forward.1} parent=11 // pred_region
          _
        $region36: #{codebert_classifier_forward.1} parent=11 // pred_fallthru
          _
      $region12: #{codebert_classifier_forward.1} parent=5 // pred_fallthru
        _
      %p596 = scmp.lt.s32.totalorder %s35, 4
      // Predicated region
      $region37: #{codebert_classifier_forward.1} parent=5 // pred_check
        %p597 = pneg %p596
      $region38: #{codebert_classifier_forward.1} parent=5 // pred_check_branch
        %599 = sbr.rel (%p597) target = $region40
      $region39: #{codebert_classifier_forward.1} parent=5 // pred_region
        // Predicated region
        $region41: #{codebert_classifier_forward.1} parent=39 // pred_check
          %p600 = pneg %p67
        $region42: #{codebert_classifier_forward.1} parent=39 // pred_check_branch
          %602 = sbr.rel (%p600) target = $region44
        $region43: #{codebert_classifier_forward.1} parent=39 // pred_region
          %p603 = scmp.lt.s32.totalorder %s42, 1
          %s604 = scalar_select %p603, %s42, 1
          %s605 = smul.addr %s604, 8
          %s606 = scalar_lea.vmem %s0, %s605
        $region44: #{codebert_classifier_forward.1} parent=39 // pred_fallthru
          _
        // Predicated region
        $region45: #{codebert_classifier_forward.1} parent=39 // pred_check
          %p607 = pneg %p93
        $region46: #{codebert_classifier_forward.1} parent=39 // pred_check_branch
          %609 = sbr.rel (%p607) target = $region48
        $region47: #{codebert_classifier_forward.1} parent=39 // pred_region
          %p610 = scmp.lt.s32.totalorder %s42, 1
          %s611 = scalar_select %p610, %s42, 1
          %s612 = scalar_lea.vmem %s1, %s611
        $region48: #{codebert_classifier_forward.1} parent=39 // pred_fallthru
          _
        // Predicated region
        $region49: #{codebert_classifier_forward.1} parent=39 // pred_check
          %p613 = pneg %p161
        $region50: #{codebert_classifier_forward.1} parent=39 // pred_check_branch
          %615 = sbr.rel (%p613) target = $region52
        $region51: #{codebert_classifier_forward.1} parent=39 // pred_region
          %p616 = scmp.lt.s32.totalorder %s43, 1
          %s617 = scalar_select %p616, %s43, 1
          %s618 = smul.addr %s617, 48
          %s619 = smul.addr %s618, 8
          %s620 = scalar_lea.vmem %s4, %s619
        $region52: #{codebert_classifier_forward.1} parent=39 // pred_fallthru
          _
        // Predicated region
        $region53: #{codebert_classifier_forward.1} parent=39 // pred_check
          %p621 = pneg %p187
        $region54: #{codebert_classifier_forward.1} parent=39 // pred_check_branch
          %623 = sbr.rel (%p621) target = $region56
        $region55: #{codebert_classifier_forward.1} parent=39 // pred_region
          %p624 = scmp.lt.s32.totalorder %s43, 1
          %s625 = scalar_select %p624, %s43, 1
          %s626 = smul.addr %s625, 3
          %s627 = scalar_lea.vmem %s5, %s626
        $region56: #{codebert_classifier_forward.1} parent=39 // pred_fallthru
          _
        // Predicated region
        $region57: #{codebert_classifier_forward.1} parent=39 // pred_check
          %p628 = pneg %p213
        $region58: #{codebert_classifier_forward.1} parent=39 // pred_check_branch
          %630 = sbr.rel (%p628) target = $region60
        $region59: #{codebert_classifier_forward.1} parent=39 // pred_region
          %s631 = sand.u32 %s203, 1
          %s632 = scalar_lea.sflag [#allocation4], %s631
          %s633 = sand.u32 %s203, 1
          %s634 = smul.addr %s633, 128
          %s635 = scalar_lea.vmem [#allocation3], %s634
          %s637 = ssub.s32 2048, 2048
          %638 = vsyncadd %s632, %s637
          %s639 = smul.addr %s43, 16
          %s640 = smul.addr %s639, 128
          %s641 = scalar_lea.hbm %s6, %s640
          %s642 = sshll.u32 %s635, 4
          %s643 = int_to_ptr.vmem [resolvable:$true] %s642
          %648 = dma.hbm_to_vmem [thread:$0]  %s641, 2048, %s643, %s632, 128, 128, 8
        $region60: #{codebert_classifier_forward.1} parent=39 // pred_fallthru
          _
        // Predicated region
        $region61: #{codebert_classifier_forward.1} parent=39 // pred_check
          %p649 = pneg %p239
        $region62: #{codebert_classifier_forward.1} parent=39 // pred_check_branch
          %651 = sbr.rel (%p649) target = $region64
        $region63: #{codebert_classifier_forward.1} parent=39 // pred_region
          %p652 = scmp.lt.s32.totalorder %s43, 1
          %s653 = scalar_select %p652, %s43, 1
          %s654 = scalar_lea.vmem %s7, %s653
        $region64: #{codebert_classifier_forward.1} parent=39 // pred_fallthru
          _
        // Predicated region
        $region65: #{codebert_classifier_forward.1} parent=39 // pred_check
          %p655 = pneg %p265
        $region66: #{codebert_classifier_forward.1} parent=39 // pred_check_branch
          %657 = sbr.rel (%p655) target = $region68
        $region67: #{codebert_classifier_forward.1} parent=39 // pred_region
          %p658 = scmp.lt.s32.totalorder %s43, 1
          %s659 = scalar_select %p658, %s43, 1
          %s660 = scalar_lea.vmem %s8, %s659
        $region68: #{codebert_classifier_forward.1} parent=39 // pred_fallthru
          _
        // Predicated region
        $region69: #{codebert_classifier_forward.1} parent=39 // pred_check
          %p661 = pneg %p291
        $region70: #{codebert_classifier_forward.1} parent=39 // pred_check_branch
          %663 = sbr.rel (%p661) target = $region72
        $region71: #{codebert_classifier_forward.1} parent=39 // pred_region
          %p664 = scmp.lt.s32.totalorder %s43, 1
          %s665 = scalar_select %p664, %s43, 1
          %s666 = scalar_lea.vmem %s9, %s665
        $region72: #{codebert_classifier_forward.1} parent=39 // pred_fallthru
          _
        // Predicated region
        $region73: #{codebert_classifier_forward.1} parent=39 // pred_check
          %p667 = pneg %p317
        $region74: #{codebert_classifier_forward.1} parent=39 // pred_check_branch
          %669 = sbr.rel (%p667) target = $region76
        $region75: #{codebert_classifier_forward.1} parent=39 // pred_region
          %s670 = sand.u32 %s35, 1
          %s671 = scalar_lea.sflag [#allocation7], %s670
          %s672 = sand.u32 %s307, 1
          %s673 = smul.addr %s672, 256
          %s674 = scalar_lea.vmem [#allocation6], %s673
          %s676 = ssub.s32 4096, 4096
          %677 = vsyncadd %s671, %s676
          %s678 = smul.addr %s43, 32
          %s679 = smul.addr %s678, 128
          %s680 = scalar_lea.hbm %s10, %s679
          %s681 = sshll.u32 %s674, 4
          %s682 = int_to_ptr.vmem [resolvable:$true] %s681
          %687 = dma.hbm_to_vmem [thread:$0]  %s680, 4096, %s682, %s671, 256, 256, 16
        $region76: #{codebert_classifier_forward.1} parent=39 // pred_fallthru
          _
        // Predicated region
        $region77: #{codebert_classifier_forward.1} parent=39 // pred_check
          %p688 = pneg %p343
        $region78: #{codebert_classifier_forward.1} parent=39 // pred_check_branch
          %690 = sbr.rel (%p688) target = $region80
        $region79: #{codebert_classifier_forward.1} parent=39 // pred_region
          %p691 = scmp.lt.s32.totalorder %s43, 1
          %s692 = scalar_select %p691, %s43, 1
          %s693 = smul.addr %s692, 2
          %s694 = scalar_lea.vmem %s11, %s693
        $region80: #{codebert_classifier_forward.1} parent=39 // pred_fallthru
          _
        // Predicated region
        $region81: #{codebert_classifier_forward.1} parent=39 // pred_check
          %p695 = pneg %p369
        $region82: #{codebert_classifier_forward.1} parent=39 // pred_check_branch
          %697 = sbr.rel (%p695) target = $region84
        $region83: #{codebert_classifier_forward.1} parent=39 // pred_region
          %s698 = sand.u32 %s35, 1
          %s699 = scalar_lea.sflag [#allocation7], %s698
          %s700 = sand.u32 %s359, 1
          %s701 = smul.addr %s700, 256
          %s702 = scalar_lea.vmem [#allocation8], %s701
          %s704 = ssub.s32 4096, 4096
          %705 = vsyncadd %s699, %s704
          %s706 = smul.addr %s43, 32
          %s707 = smul.addr %s706, 128
          %s708 = scalar_lea.hbm %s12, %s707
          %s709 = sshll.u32 %s702, 4
          %s710 = int_to_ptr.vmem [resolvable:$true] %s709
          %715 = dma.hbm_to_vmem [thread:$0]  %s708, 4096, %s710, %s699, 128, 128, 8
        $region84: #{codebert_classifier_forward.1} parent=39 // pred_fallthru
          _
        // Predicated region
        $region85: #{codebert_classifier_forward.1} parent=39 // pred_check
          %p716 = pneg %p395
        $region86: #{codebert_classifier_forward.1} parent=39 // pred_check_branch
          %718 = sbr.rel (%p716) target = $region88
        $region87: #{codebert_classifier_forward.1} parent=39 // pred_region
          %p719 = scmp.lt.s32.totalorder %s43, 1
          %s720 = scalar_select %p719, %s43, 1
          %s721 = scalar_lea.vmem %s13, %s720
        $region88: #{codebert_classifier_forward.1} parent=39 // pred_fallthru
          _
        // Predicated region
        $region89: #{codebert_classifier_forward.1} parent=39 // pred_check
          %p722 = pneg %p421
        $region90: #{codebert_classifier_forward.1} parent=39 // pred_check_branch
          %724 = sbr.rel (%p722) target = $region92
        $region91: #{codebert_classifier_forward.1} parent=39 // pred_region
          %p725 = scmp.lt.s32.totalorder %s43, 1
          %s726 = scalar_select %p725, %s43, 1
          %s727 = scalar_lea.vmem %s14, %s726
        $region92: #{codebert_classifier_forward.1} parent=39 // pred_fallthru
          _
        // Predicated region
        $region93: #{codebert_classifier_forward.1} parent=39 // pred_check
          %p728 = pneg %p447
        $region94: #{codebert_classifier_forward.1} parent=39 // pred_check_branch
          %730 = sbr.rel (%p728) target = $region96
        $region95: #{codebert_classifier_forward.1} parent=39 // pred_region
          %p731 = scmp.lt.s32.totalorder %s43, 1
          %s732 = scalar_select %p731, %s43, 1
          %s733 = scalar_lea.vmem %s15, %s732
        $region96: #{codebert_classifier_forward.1} parent=39 // pred_fallthru
          _
      $region40: #{codebert_classifier_forward.1} parent=5 // pred_fallthru
        _
      %p734 = scmp.le.s32.totalorder 1, %s35
      %p735 = scmp.lt.s32.totalorder %s35, 5
      %p736 = pnand %p734, %p735
      %p737 = pneg %p736
      // Predicated region
      $region97: #{codebert_classifier_forward.1} parent=5 // pred_check
        _
      $region98: #{codebert_classifier_forward.1} parent=5 // pred_check_branch
        %739 = sbr.rel (%p736) target = $region100
      $region99: #{codebert_classifier_forward.1} parent=5 // pred_region
        %s740 = ssub.s32 %s35, 1
        %s741 = sand.u32 %s206, 1
        %s742 = scalar_lea.sflag [#allocation4], %s741
        %s743 = sand.u32 %s206, 1
        %s744 = smul.addr %s743, 128
        %s745 = scalar_lea.vmem [#allocation3], %s744
        // Predicated region
        $region101: #{codebert_classifier_forward.1} parent=99 // pred_check
          %p746 = pneg %p219
        $region102: #{codebert_classifier_forward.1} parent=99 // pred_check_branch
          %748 = sbr.rel (%p746) target = $region104
        $region103: #{codebert_classifier_forward.1} parent=99 // pred_region
          %749 = dma.done %s742, 2048
        $region104: #{codebert_classifier_forward.1} parent=99 // pred_fallthru
          _
        %s750 = sand.u32 %s40, 1
        %s751 = scalar_lea.sflag [#allocation7], %s750
        %s752 = sand.u32 %s310, 1
        %s753 = smul.addr %s752, 256
        %s754 = scalar_lea.vmem [#allocation6], %s753
        // Predicated region
        $region105: #{codebert_classifier_forward.1} parent=99 // pred_check
          %p755 = pneg %p323
        $region106: #{codebert_classifier_forward.1} parent=99 // pred_check_branch
          %757 = sbr.rel (%p755) target = $region108
        $region107: #{codebert_classifier_forward.1} parent=99 // pred_region
          %758 = dma.done %s751, 4096
        $region108: #{codebert_classifier_forward.1} parent=99 // pred_fallthru
          _
        %s759 = sand.u32 %s40, 1
        %s760 = scalar_lea.sflag [#allocation7], %s759
        %s761 = sand.u32 %s362, 1
        %s762 = smul.addr %s761, 256
        %s763 = scalar_lea.vmem [#allocation8], %s762
        // Predicated region
        $region109: #{codebert_classifier_forward.1} parent=99 // pred_check
          %p764 = pneg %p375
        $region110: #{codebert_classifier_forward.1} parent=99 // pred_check_branch
          %766 = sbr.rel (%p764) target = $region112
        $region111: #{codebert_classifier_forward.1} parent=99 // pred_region
          %767 = dma.done %s760, 4096
        $region112: #{codebert_classifier_forward.1} parent=99 // pred_fallthru
          _
        %p768 = scmp.lt.s32.totalorder %s44, 1
        %s769 = scalar_select %p768, %s44, 1
        %s770 = smul.addr %s769, 8
        %s771 = scalar_lea.vmem %s0, %s770
        %p772 = pneg %p73
        %p773 = pneg %p70
        %p774 = scmp.lt.s32.totalorder %s44, 1
        %s775 = scalar_select %p774, %s44, 1
        %s776 = scalar_lea.vmem %s1, %s775
        %p777 = pneg %p99
        %p778 = pneg %p96
        %p779 = pneg %p120
        %p780 = pneg %p117
        %p781 = pneg %p141
        %p782 = pneg %p138
        %p783 = scmp.lt.s32.totalorder %s45, 1
        %s784 = scalar_select %p783, %s45, 1
        %s785 = smul.addr %s784, 48
        %s786 = smul.addr %s785, 8
        %s787 = scalar_lea.vmem %s4, %s786
        %p788 = pneg %p167
        %p789 = pneg %p164
        %p790 = scmp.lt.s32.totalorder %s45, 1
        %s791 = scalar_select %p790, %s45, 1
        %s792 = smul.addr %s791, 3
        %s793 = scalar_lea.vmem %s5, %s792
        %p794 = pneg %p193
        %p795 = pneg %p190
        %s796 = sand.u32 %s206, 1
        %s797 = scalar_lea.sflag [#allocation4], %s796
        %s798 = sand.u32 %s206, 1
        %s799 = smul.addr %s798, 128
        %s800 = scalar_lea.vmem [#allocation3], %s799
        %p801 = pneg %p219
        %p802 = pneg %p216
        %p803 = scmp.lt.s32.totalorder %s45, 1
        %s804 = scalar_select %p803, %s45, 1
        %s805 = scalar_lea.vmem %s7, %s804
        %p806 = pneg %p245
        %p807 = pneg %p242
        %p808 = scmp.lt.s32.totalorder %s45, 1
        %s809 = scalar_select %p808, %s45, 1
        %s810 = scalar_lea.vmem %s8, %s809
        %p811 = pneg %p271
        %p812 = pneg %p268
        %p813 = scmp.lt.s32.totalorder %s45, 1
        %s814 = scalar_select %p813, %s45, 1
        %s815 = scalar_lea.vmem %s9, %s814
        %p816 = pneg %p297
        %p817 = pneg %p294
        %s818 = sand.u32 %s40, 1
        %s819 = scalar_lea.sflag [#allocation7], %s818
        %s820 = sand.u32 %s310, 1
        %s821 = smul.addr %s820, 256
        %s822 = scalar_lea.vmem [#allocation6], %s821
        %p823 = pneg %p323
        %p824 = pneg %p320
        %p825 = scmp.lt.s32.totalorder %s45, 1
        %s826 = scalar_select %p825, %s45, 1
        %s827 = smul.addr %s826, 2
        %s828 = scalar_lea.vmem %s11, %s827
        %p829 = pneg %p349
        %p830 = pneg %p346
        %s831 = sand.u32 %s40, 1
        %s832 = scalar_lea.sflag [#allocation7], %s831
        %s833 = sand.u32 %s362, 1
        %s834 = smul.addr %s833, 256
        %s835 = scalar_lea.vmem [#allocation8], %s834
        %p836 = pneg %p375
        %p837 = pneg %p372
        %p838 = scmp.lt.s32.totalorder %s45, 1
        %s839 = scalar_select %p838, %s45, 1
        %s840 = scalar_lea.vmem %s13, %s839
        %p841 = pneg %p401
        %p842 = pneg %p398
        %p843 = scmp.lt.s32.totalorder %s45, 1
        %s844 = scalar_select %p843, %s45, 1
        %s845 = scalar_lea.vmem %s14, %s844
        %p846 = pneg %p427
        %p847 = pneg %p424
        %p848 = scmp.lt.s32.totalorder %s45, 1
        %s849 = scalar_select %p848, %s45, 1
        %s850 = scalar_lea.vmem %s15, %s849
        %p851 = pneg %p453
        %p852 = pneg %p450
        %p853 = pneg %p474
        %p854 = pneg %p471
        %p855 = pneg %p495
        %p856 = pneg %p492
        %p857 = pneg %p516
        %p858 = pneg %p513
        %p859 = pneg %p537
        %p860 = pneg %p534
        %p861 = pneg %p563
        %p862 = pneg %p560
        %s863 = sand.u32 %s550, 1
        %s864 = scalar_lea.sflag [#allocation5], %s863
        %s865 = sand.u32 %s550, 1
        %s866 = scalar_lea.vmem [#allocation9], %s865
        %p867 = scmp.lt.s32.totalorder %s44, 1
        %s868 = scalar_select %p867, %s44, 1
        %s869 = smul.addr %s868, 8
        %s870 = scalar_lea.vmem %s0, %s869
        %p871 = scmp.lt.s32.totalorder %s44, 1
        %s872 = scalar_select %p871, %s44, 1
        %s873 = scalar_lea.vmem %s1, %s872
        %p874 = scmp.lt.s32.totalorder %s45, 1
        %s875 = scalar_select %p874, %s45, 1
        %s876 = smul.addr %s875, 48
        %s877 = smul.addr %s876, 8
        %s878 = scalar_lea.vmem %s4, %s877
        %p879 = scmp.lt.s32.totalorder %s45, 1
        %s880 = scalar_select %p879, %s45, 1
        %s881 = smul.addr %s880, 3
        %s882 = scalar_lea.vmem %s5, %s881
        %p883 = scmp.lt.s32.totalorder %s45, 1
        %s884 = scalar_select %p883, %s45, 1
        %s885 = scalar_lea.vmem %s7, %s884
        %p886 = scmp.lt.s32.totalorder %s45, 1
        %s887 = scalar_select %p886, %s45, 1
        %s888 = scalar_lea.vmem %s8, %s887
        %p889 = scmp.lt.s32.totalorder %s45, 1
        %s890 = scalar_select %p889, %s45, 1
        %s891 = scalar_lea.vmem %s9, %s890
        %p892 = scmp.lt.s32.totalorder %s45, 1
        %s893 = scalar_select %p892, %s45, 1
        %s894 = smul.addr %s893, 2
        %s895 = scalar_lea.vmem %s11, %s894
        %p896 = scmp.lt.s32.totalorder %s45, 1
        %s897 = scalar_select %p896, %s45, 1
        %s898 = scalar_lea.vmem %s13, %s897
        %p899 = scmp.lt.s32.totalorder %s45, 1
        %s900 = scalar_select %p899, %s45, 1
        %s901 = scalar_lea.vmem %s14, %s900
        %p902 = scmp.lt.s32.totalorder %s45, 1
        %s903 = scalar_select %p902, %s45, 1
        %s904 = scalar_lea.vmem %s15, %s903
        %p905 = scmp.eq.s32.totalorder %s45, 0
        // Predicated region
        $region113: #{codebert_classifier_forward.1} parent=99 // pred_check
          %p906 = pneg %p905
        $region114: #{codebert_classifier_forward.1} parent=99 // pred_check_branch
          %908 = sbr.rel (%p906) target = $region116
        $region115: #{codebert_classifier_forward.1} parent=99 // pred_region
          %v909 = vld [vmem:[%s870] sm:$0xff]
          %v910 = vld [vmem:[%s2] sm:$0x1]
          %v911 = vld [vmem:[%s3] sm:$0x1]
          %912 = vadd.xlane.f32.xlu0 %v909
          %v913 = vpop.xlane.xlu0 %912
          %v914 = vrcp.pop 128.0
          %v915 = vmul.f32 %v913, %v914
          %v916 = vsub.f32 %v909, %v915
          %v917 = vmul.f32 %v916, %v916
          %918 = vadd.xlane.f32.xlu0 %v917
          %v919 = vpop.xlane.xlu0 %918
          %v920 = vmul.f32 %v919, %v914
          %v921 = vadd.f32 %v920, 1e-05
          %v922 = vrsqrt.pop %v921
          %v923 = vmul.f32 %v916, %v922
          %v925 = vlaneseq
          %v926 = vshrl.u32 %v925, 7
          %v927 = vsub.s32 0, %v926
          %v928 = vrot.slane %v910, %v927
          %v930 = vmul.f32 %v923, %v928
          %v932 = vlaneseq
          %v933 = vshrl.u32 %v932, 7
          %v934 = vsub.s32 0, %v933
          %v935 = vrot.slane %v911, %v934
          %v937 = vadd.f32 %v930, %v935
          %938 = vst [vmem:[#allocation2] sm:$0xff] %v937
        $region116: #{codebert_classifier_forward.1} parent=99 // pred_fallthru
          _
        %v939 = vld [vmem:[#allocation2] sm:$0xff]
        %v940 = vld [vmem:[%s878] sm:$0xff]
        %v941 = vld [vmem:[%s878 + $0x8] sm:$0xff]
        %v942 = vld [vmem:[%s878 + $0x10] sm:$0xff]
        %v943 = vld [vmem:[%s878 + $0x18] sm:$0xff]
        %v944 = vld [vmem:[%s878 + $0x20] sm:$0xff]
        %v945 = vld [vmem:[%s878 + $0x28] sm:$0xff]
        %v946 = vld [vmem:[%s878 + $0x30] sm:$0xff]
        %v947 = vld [vmem:[%s878 + $0x38] sm:$0xff]
        %v948 = vld [vmem:[%s878 + $0x40] sm:$0xff]
        %v949 = vld [vmem:[%s878 + $0x48] sm:$0xff]
        %v950 = vld [vmem:[%s878 + $0x50] sm:$0xff]
        %v951 = vld [vmem:[%s878 + $0x58] sm:$0xff]
        %v952 = vld [vmem:[%s878 + $0x60] sm:$0xff]
        %v953 = vld [vmem:[%s878 + $0x68] sm:$0xff]
        %v954 = vld [vmem:[%s878 + $0x70] sm:$0xff]
        %v955 = vld [vmem:[%s878 + $0x78] sm:$0xff]
        %v956 = vld [vmem:[%s878 + $0x80] sm:$0xff]
        %v957 = vld [vmem:[%s878 + $0x88] sm:$0xff]
        %v958 = vld [vmem:[%s878 + $0x90] sm:$0xff]
        %v959 = vld [vmem:[%s878 + $0x98] sm:$0xff]
        %v960 = vld [vmem:[%s878 + $0xa0] sm:$0xff]
        %v961 = vld [vmem:[%s878 + $0xa8] sm:$0xff]
        %v962 = vld [vmem:[%s878 + $0xb0] sm:$0xff]
        %v963 = vld [vmem:[%s878 + $0xb8] sm:$0xff]
        %v964 = vld [vmem:[%s878 + $0xc0] sm:$0xff]
        %v965 = vld [vmem:[%s878 + $0xc8] sm:$0xff]
        %v966 = vld [vmem:[%s878 + $0xd0] sm:$0xff]
        %v967 = vld [vmem:[%s878 + $0xd8] sm:$0xff]
        %v968 = vld [vmem:[%s878 + $0xe0] sm:$0xff]
        %v969 = vld [vmem:[%s878 + $0xe8] sm:$0xff]
        %v970 = vld [vmem:[%s878 + $0xf0] sm:$0xff]
        %v971 = vld [vmem:[%s878 + $0xf8] sm:$0xff]
        %v972 = vld [vmem:[%s878 + $0x100] sm:$0xff]
        %v973 = vld [vmem:[%s878 + $0x108] sm:$0xff]
        %v974 = vld [vmem:[%s878 + $0x110] sm:$0xff]
        %v975 = vld [vmem:[%s878 + $0x118] sm:$0xff]
        %v976 = vld [vmem:[%s878 + $0x120] sm:$0xff]
        %v977 = vld [vmem:[%s878 + $0x128] sm:$0xff]
        %v978 = vld [vmem:[%s878 + $0x130] sm:$0xff]
        %v979 = vld [vmem:[%s878 + $0x138] sm:$0xff]
        %v980 = vld [vmem:[%s878 + $0x140] sm:$0xff]
        %v981 = vld [vmem:[%s878 + $0x148] sm:$0xff]
        %v982 = vld [vmem:[%s878 + $0x150] sm:$0xff]
        %v983 = vld [vmem:[%s878 + $0x158] sm:$0xff]
        %v984 = vld [vmem:[%s878 + $0x160] sm:$0xff]
        %v985 = vld [vmem:[%s878 + $0x168] sm:$0xff]
        %v986 = vld [vmem:[%s878 + $0x170] sm:$0xff]
        %v987 = vld [vmem:[%s878 + $0x178] sm:$0xff]
        %v988 = vld [vmem:[%s882] sm:$0x7]
        %v990 = vlaneseq
        %v991 = vshrl.u32 %v990, 7
        %v992 = vsub.s32 0, %v991
        %v993 = vrot.slane %v988, %v992
        %v994 = vlaneseq
        %v995 = vshrl.u32 %v994, 7
        %v996 = vsub.s32 1, %v995
        %v997 = vrot.slane %v988, %v996
        %v998 = vlaneseq
        %v999 = vshrl.u32 %v998, 7
        %v1000 = vsub.s32 2, %v999
        %v1001 = vrot.slane %v988, %v1000
        %1005 = vmatprep.subr.mxu0 %v941
        %1006 = vmatpush1.msra.mxu0 %v940
        %1007 = vmatprep.subr.mxu0 %v944
        %1008 = vmatpush1.msra.mxu0 %v943
        %1009 = vmatprep.subr.mxu0 %v947
        %1010 = vmatpush1.msra.mxu0 %v946
        %1011 = vmatprep.subr.mxu0 %v950
        %1012 = vmatpush1.msra.mxu0 %v949
        %1013 = vmatprep.subr.mxu0 %v953
        %1014 = vmatpush1.msra.mxu0 %v952
        %1015 = vmatprep.subr.mxu0 %v956
        %1016 = vmatpush1.msra.mxu0 %v955
        %1017 = vmatprep.subr.mxu0 %v959
        %1018 = vmatpush1.msra.mxu0 %v958
        %1019 = vmatprep.subr.mxu0 %v962
        %1020 = vmatpush1.msra.mxu0 %v961
        %1021 = vmatprep.subr.mxu0 %v965
        %1022 = vmatpush1.msra.mxu0 %v964
        %1023 = vmatprep.subr.mxu0 %v968
        %1024 = vmatpush1.msra.mxu0 %v967
        %1025 = vmatprep.subr.mxu0 %v971
        %1026 = vmatpush1.msra.mxu0 %v970
        %1027 = vmatprep.subr.mxu0 %v974
        %1028 = vmatpush1.msra.mxu0 %v973
        %1029 = vmatprep.subr.mxu0 %v977
        %1030 = vmatpush1.msra.mxu0 %v976
        %1031 = vmatprep.subr.mxu0 %v980
        %1032 = vmatpush1.msra.mxu0 %v979
        %1033 = vmatprep.subr.mxu0 %v983
        %1034 = vmatpush1.msra.mxu0 %v982
        %1035 = vmatprep.subr.mxu0 %v986
        %1036 = vmatpush1.msra.mxu0 %v985
        %1037 = vmatprep.subr.mxu0 0.0
        %1038 = vmatpush1.msra.mxu0 0.0
        %1039 = vmatprep.subr.mxu0 0.0
        %1040 = vmatpush1.msra.mxu0 0.0
        %1041 = vmatprep.subr.mxu0 0.0
        %1042 = vmatpush1.msra.mxu0 0.0
        %1043 = vmatprep.subr.mxu0 0.0
        %1044 = vmatpush1.msra.mxu0 0.0
        %1045 = vmatprep.subr.mxu0 0.0
        %1046 = vmatpush1.msra.mxu0 0.0
        %1047 = vmatprep.subr.mxu0 0.0
        %1048 = vmatpush1.msra.mxu0 0.0
        %1049 = vmatprep.subr.mxu0 0.0
        %1050 = vmatpush1.msra.mxu0 0.0
        %1051 = vmatprep.subr.mxu0 0.0
        %1052 = vmatpush1.msra.mxu0 0.0
        %1053 = vmatprep.subr.mxu0 0.0
        %1054 = vmatpush1.msra.mxu0 0.0
        %1055 = vmatprep.subr.mxu0 0.0
        %1056 = vmatpush1.msra.mxu0 0.0
        %1057 = vmatprep.subr.mxu0 0.0
        %1058 = vmatpush1.msra.mxu0 0.0
        %1059 = vmatprep.subr.mxu0 0.0
        %1060 = vmatpush1.msra.mxu0 0.0
        %1061 = vmatprep.subr.mxu0 0.0
        %1062 = vmatpush1.msra.mxu0 0.0
        %1063 = vmatprep.subr.mxu0 0.0
        %1064 = vmatpush1.msra.mxu0 0.0
        %1065 = vmatprep.subr.mxu0 0.0
        %1066 = vmatpush1.msra.mxu0 0.0
        %1067 = vmatprep.subr.mxu0 0.0
        %1068 = vmatpush1.msra.mxu0 0.0
        %1069 = vmatprep.mubr.f32.mxu0 0.0
        %1070 = vmatmul.mubr.f32.gmra.mrb[0].mxu0 %v939
        %v1071 = vpop.f32.mrb[0].mxu0
        %v1072 = vadd.f32 %v993, %v1071
        %v1073 = vpop.f32.mrb[0].mxu0
        %v1074 = vadd.f32 %v997, %v1073
        %1075 = vdwg.mxu0
        %1076 = vmatprep.subr.mxu0 0.0
        %1077 = vmatpush1.msra.mxu0 %v942
        %1078 = vmatprep.subr.mxu0 0.0
        %1079 = vmatpush1.msra.mxu0 %v945
        %1080 = vmatprep.subr.mxu0 0.0
        %1081 = vmatpush1.msra.mxu0 %v948
        %1082 = vmatprep.subr.mxu0 0.0
        %1083 = vmatpush1.msra.mxu0 %v951
        %1084 = vmatprep.subr.mxu0 0.0
        %1085 = vmatpush1.msra.mxu0 %v954
        %1086 = vmatprep.subr.mxu0 0.0
        %1087 = vmatpush1.msra.mxu0 %v957
        %1088 = vmatprep.subr.mxu0 0.0
        %1089 = vmatpush1.msra.mxu0 %v960
        %1090 = vmatprep.subr.mxu0 0.0
        %1091 = vmatpush1.msra.mxu0 %v963
        %1092 = vmatprep.subr.mxu0 0.0
        %1093 = vmatpush1.msra.mxu0 %v966
        %1094 = vmatprep.subr.mxu0 0.0
        %1095 = vmatpush1.msra.mxu0 %v969
        %1096 = vmatprep.subr.mxu0 0.0
        %1097 = vmatpush1.msra.mxu0 %v972
        %1098 = vmatprep.subr.mxu0 0.0
        %1099 = vmatpush1.msra.mxu0 %v975
        %1100 = vmatprep.subr.mxu0 0.0
        %1101 = vmatpush1.msra.mxu0 %v978
        %1102 = vmatprep.subr.mxu0 0.0
        %1103 = vmatpush1.msra.mxu0 %v981
        %1104 = vmatprep.subr.mxu0 0.0
        %1105 = vmatpush1.msra.mxu0 %v984
        %1106 = vmatprep.subr.mxu0 0.0
        %1107 = vmatpush1.msra.mxu0 %v987
        %1108 = vmatprep.subr.mxu0 0.0
        %1109 = vmatpush1.msra.mxu0 0.0
        %1110 = vmatprep.subr.mxu0 0.0
        %1111 = vmatpush1.msra.mxu0 0.0
        %1112 = vmatprep.subr.mxu0 0.0
        %1113 = vmatpush1.msra.mxu0 0.0
        %1114 = vmatprep.subr.mxu0 0.0
        %1115 = vmatpush1.msra.mxu0 0.0
        %1116 = vmatprep.subr.mxu0 0.0
        %1117 = vmatpush1.msra.mxu0 0.0
        %1118 = vmatprep.subr.mxu0 0.0
        %1119 = vmatpush1.msra.mxu0 0.0
        %1120 = vmatprep.subr.mxu0 0.0
        %1121 = vmatpush1.msra.mxu0 0.0
        %1122 = vmatprep.subr.mxu0 0.0
        %1123 = vmatpush1.msra.mxu0 0.0
        %1124 = vmatprep.subr.mxu0 0.0
        %1125 = vmatpush1.msra.mxu0 0.0
        %1126 = vmatprep.subr.mxu0 0.0
        %1127 = vmatpush1.msra.mxu0 0.0
        %1128 = vmatprep.subr.mxu0 0.0
        %1129 = vmatpush1.msra.mxu0 0.0
        %1130 = vmatprep.subr.mxu0 0.0
        %1131 = vmatpush1.msra.mxu0 0.0
        %1132 = vmatprep.subr.mxu0 0.0
        %1133 = vmatpush1.msra.mxu0 0.0
        %1134 = vmatprep.subr.mxu0 0.0
        %1135 = vmatpush1.msra.mxu0 0.0
        %1136 = vmatprep.subr.mxu0 0.0
        %1137 = vmatpush1.msra.mxu0 0.0
        %1138 = vmatprep.subr.mxu0 0.0
        %1139 = vmatpush1.msra.mxu0 0.0
        %1140 = vmatprep.mubr.f32.mxu0 0.0
        %1141 = vmatmul.mubr.f32.gmra.mrb[0].mxu0 %v939
        %v1142 = vpop.f32.mrb[0].mxu0
        %v1143 = vadd.f32 %v1001, %v1142
        %v1144 = vpop.f32.mrb[0].mxu0
        %1145 = vdwg.mxu0
        %v1146 = vld [vmem:[%s873] sm:$0x1]
        %v1147 = vlaneseq
        %v1148 = vand.u32 %v1147, 127
        %vm1149 = vcmp.ge.s32.totalorder %v1148, 0
        %vm1150 = vcmp.lt.s32.totalorder %v1148, 32
        %vm1151 = vmand %vm1149, %vm1150
        %v1152 = vsel %vm1151, 1, 0
        %v1153 = vcvt.s32.f32 %v1152
        %vm1154 = vcmp.ge.s32.totalorder %v1148, 32
        %vm1155 = vcmp.lt.s32.totalorder %v1148, 64
        %vm1156 = vmand %vm1154, %vm1155
        %v1157 = vsel %vm1156, 1, 0
        %v1158 = vcvt.s32.f32 %v1157
        %vm1159 = vcmp.ge.s32.totalorder %v1148, 64
        %vm1160 = vcmp.lt.s32.totalorder %v1148, 96
        %vm1161 = vmand %vm1159, %vm1160
        %v1162 = vsel %vm1161, 1, 0
        %v1163 = vcvt.s32.f32 %v1162
        %vm1164 = vcmp.ge.s32.totalorder %v1148, 96
        %vm1165 = vcmp.lt.s32.totalorder %v1148, 128
        %vm1166 = vmand %vm1164, %vm1165
        %v1167 = vsel %vm1166, 1, 0
        %v1168 = vcvt.s32.f32 %v1167
        %v1169 = vmul.f32 %v1072, %v1153
        %v1170 = vmul.f32 %v1072, %v1158
        %v1171 = vmul.f32 %v1072, %v1163
        %v1172 = vmul.f32 %v1072, %v1168
        %1173 = vmatprep.subr.mxu0 0.0
        %1174 = vmatpush1.xpose.msra.mxu0 %v1074
        %1175 = vmatprep.subr.mxu0 0.0
        %1176 = vmatpush1.xpose.msra.mxu0 0.0
        %1177 = vmatprep.subr.mxu0 0.0
        %1178 = vmatpush1.xpose.msra.mxu0 0.0
        %1179 = vmatprep.subr.mxu0 0.0
        %1180 = vmatpush1.xpose.msra.mxu0 0.0
        %1181 = vmatprep.subr.mxu0 0.0
        %1182 = vmatpush1.xpose.msra.mxu0 0.0
        %1183 = vmatprep.subr.mxu0 0.0
        %1184 = vmatpush1.xpose.msra.mxu0 0.0
        %1185 = vmatprep.subr.mxu0 0.0
        %1186 = vmatpush1.xpose.msra.mxu0 0.0
        %1187 = vmatprep.subr.mxu0 0.0
        %1188 = vmatpush1.xpose.msra.mxu0 0.0
        %1189 = vmatprep.subr.mxu0 0.0
        %1190 = vmatpush1.xpose.msra.mxu0 0.0
        %1191 = vmatprep.subr.mxu0 0.0
        %1192 = vmatpush1.xpose.msra.mxu0 0.0
        %1193 = vmatprep.subr.mxu0 0.0
        %1194 = vmatpush1.xpose.msra.mxu0 0.0
        %1195 = vmatprep.subr.mxu0 0.0
        %1196 = vmatpush1.xpose.msra.mxu0 0.0
        %1197 = vmatprep.subr.mxu0 0.0
        %1198 = vmatpush1.xpose.msra.mxu0 0.0
        %1199 = vmatprep.subr.mxu0 0.0
        %1200 = vmatpush1.xpose.msra.mxu0 0.0
        %1201 = vmatprep.subr.mxu0 0.0
        %1202 = vmatpush1.xpose.msra.mxu0 0.0
        %1203 = vmatprep.subr.mxu0 0.0
        %1204 = vmatpush1.xpose.msra.mxu0 0.0
        %1205 = vmatprep.subr.mxu0 0.0
        %1206 = vmatpush1.xpose.msra.mxu0 0.0
        %1207 = vmatprep.subr.mxu0 0.0
        %1208 = vmatpush1.xpose.msra.mxu0 0.0
        %1209 = vmatprep.subr.mxu0 0.0
        %1210 = vmatpush1.xpose.msra.mxu0 0.0
        %1211 = vmatprep.subr.mxu0 0.0
        %1212 = vmatpush1.xpose.msra.mxu0 0.0
        %1213 = vmatprep.subr.mxu0 0.0
        %1214 = vmatpush1.xpose.msra.mxu0 0.0
        %1215 = vmatprep.subr.mxu0 0.0
        %1216 = vmatpush1.xpose.msra.mxu0 0.0
        %1217 = vmatprep.subr.mxu0 0.0
        %1218 = vmatpush1.xpose.msra.mxu0 0.0
        %1219 = vmatprep.subr.mxu0 0.0
        %1220 = vmatpush1.xpose.msra.mxu0 0.0
        %1221 = vmatprep.subr.mxu0 0.0
        %1222 = vmatpush1.xpose.msra.mxu0 0.0
        %1223 = vmatprep.subr.mxu0 0.0
        %1224 = vmatpush1.xpose.msra.mxu0 0.0
        %1225 = vmatprep.subr.mxu0 0.0
        %1226 = vmatpush1.xpose.msra.mxu0 0.0
        %1227 = vmatprep.subr.mxu0 0.0
        %1228 = vmatpush1.xpose.msra.mxu0 0.0
        %1229 = vmatprep.subr.mxu0 0.0
        %1230 = vmatpush1.xpose.msra.mxu0 0.0
        %1231 = vmatprep.subr.mxu0 0.0
        %1232 = vmatpush1.xpose.msra.mxu0 0.0
        %1233 = vmatprep.subr.mxu0 0.0
        %1234 = vmatpush1.xpose.msra.mxu0 0.0
        %1235 = vmatprep.subr.mxu0 0.0
        %1236 = vmatpush1.xpose.msra.mxu0 0.0
        %1237 = vmatprep.mubr.f32.mxu0 0.0
        %1238 = vmatmul.mubr.f32.gmra.mrb[0].mxu0 %v1169
        %v1239 = vpop.f32.mrb[0].mxu0
        %v1240 = vadd.f32 0.0, %v1239
        %v1241 = vpop.f32.mrb[0].mxu0
        %1242 = vmatprep.mubr.f32.mxu0 0.0
        %1243 = vmatmul.mubr.f32.gmra.mrb[0].mxu0 %v1170
        %v1244 = vpop.f32.mrb[0].mxu0
        %v1245 = vadd.f32 0.0, %v1244
        %v1246 = vpop.f32.mrb[0].mxu0
        %1247 = vmatprep.mubr.f32.mxu0 0.0
        %1248 = vmatmul.mubr.f32.gmra.mrb[0].mxu0 %v1171
        %v1249 = vpop.f32.mrb[0].mxu0
        %v1250 = vadd.f32 0.0, %v1249
        %v1251 = vpop.f32.mrb[0].mxu0
        %1252 = vmatprep.mubr.f32.mxu0 0.0
        %1253 = vmatmul.mubr.f32.gmra.mrb[0].mxu0 %v1172
        %v1254 = vpop.f32.mrb[0].mxu0
        %v1255 = vadd.f32 0.0, %v1254
        %v1256 = vpop.f32.mrb[0].mxu0
        %1257 = vdwg.mxu0
        %v1258 = vmul.f32 %v1240, 0.17677669
        %v1259 = vmul.f32 %v1245, 0.17677669
        %v1260 = vmul.f32 %v1250, 0.17677669
        %v1261 = vmul.f32 %v1255, 0.17677669
        %v1263 = vlaneseq
        %v1264 = vshrl.u32 %v1263, 7
        %v1265 = vsub.s32 0, %v1264
        %v1266 = vrot.slane %v1146, %v1265
        %v1268 = vadd.f32 %v1258, %v1266
        %v1269 = vadd.f32 %v1259, %v1266
        %v1270 = vadd.f32 %v1260, %v1266
        %v1271 = vadd.f32 %v1261, %v1266
        %vm1272 = vcmask 64512
        %v1273 = vsel %vm1272, %v1268, -inf
        %1274 = vmax.xlane.f32.xlu0 %v1273
        %v1275 = vpop.xlane.xlu0 %1274
        %v1276 = vsel %vm1272, %v1269, -inf
        %1277 = vmax.xlane.f32.xlu0 %v1276
        %v1278 = vpop.xlane.xlu0 %1277
        %v1279 = vsel %vm1272, %v1270, -inf
        %1280 = vmax.xlane.f32.xlu0 %v1279
        %v1281 = vpop.xlane.xlu0 %1280
        %v1282 = vsel %vm1272, %v1271, -inf
        %1283 = vmax.xlane.f32.xlu0 %v1282
        %v1284 = vpop.xlane.xlu0 %1283
        %v1285 = vsub.f32 %v1268, %v1275
        %v1286 = vsub.f32 %v1269, %v1278
        %v1287 = vsub.f32 %v1270, %v1281
        %v1288 = vsub.f32 %v1271, %v1284
        %v1289 = vmul.f32 %v1285, 1.442695
        %v1290 = vpow.pop %v1289
        %v1291 = vmul.f32 %v1286, 1.442695
        %v1292 = vpow.pop %v1291
        %v1293 = vmul.f32 %v1287, 1.442695
        %v1294 = vpow.pop %v1293
        %v1295 = vmul.f32 %v1288, 1.442695
        %v1296 = vpow.pop %v1295
        %v1297 = vsel %vm1272, %v1290, 0.0
        %1298 = vadd.xlane.f32.xlu0 %v1297
        %v1299 = vpop.xlane.xlu0 %1298
        %v1300 = vsel %vm1272, %v1292, 0.0
        %1301 = vadd.xlane.f32.xlu0 %v1300
        %v1302 = vpop.xlane.xlu0 %1301
        %v1303 = vsel %vm1272, %v1294, 0.0
        %1304 = vadd.xlane.f32.xlu0 %v1303
        %v1305 = vpop.xlane.xlu0 %1304
        %v1306 = vsel %vm1272, %v1296, 0.0
        %1307 = vadd.xlane.f32.xlu0 %v1306
        %v1308 = vpop.xlane.xlu0 %1307
        %v1309 = vrcp.pop %v1299
        %v1310 = vrcp.pop %v1302
        %v1311 = vrcp.pop %v1305
        %v1312 = vrcp.pop %v1308
        %v1313 = vmul.f32 %v1290, %v1309
        %v1314 = vmul.f32 %v1292, %v1310
        %v1315 = vmul.f32 %v1294, %v1311
        %v1316 = vmul.f32 %v1296, %v1312
        %v1318 = vsel %vm1272, %v1313, 0
        %v1321 = vsel %vm1272, %v1314, 0
        %v1324 = vsel %vm1272, %v1315, 0
        %v1327 = vsel %vm1272, %v1316, 0
        %1329 = vmatprep.subr.mxu0 0.0
        %1330 = vmatpush1.msra.mxu0 %v1143
        %1331 = vmatprep.subr.mxu0 0.0
        %1332 = vmatpush1.msra.mxu0 0.0
        %1333 = vmatprep.subr.mxu0 0.0
        %1334 = vmatpush1.msra.mxu0 0.0
        %1335 = vmatprep.subr.mxu0 0.0
        %1336 = vmatpush1.msra.mxu0 0.0
        %1337 = vmatprep.subr.mxu0 0.0
        %1338 = vmatpush1.msra.mxu0 0.0
        %1339 = vmatprep.subr.mxu0 0.0
        %1340 = vmatpush1.msra.mxu0 0.0
        %1341 = vmatprep.subr.mxu0 0.0
        %1342 = vmatpush1.msra.mxu0 0.0
        %1343 = vmatprep.subr.mxu0 0.0
        %1344 = vmatpush1.msra.mxu0 0.0
        %1345 = vmatprep.subr.mxu0 0.0
        %1346 = vmatpush1.msra.mxu0 0.0
        %1347 = vmatprep.subr.mxu0 0.0
        %1348 = vmatpush1.msra.mxu0 0.0
        %1349 = vmatprep.subr.mxu0 0.0
        %1350 = vmatpush1.msra.mxu0 0.0
        %1351 = vmatprep.subr.mxu0 0.0
        %1352 = vmatpush1.msra.mxu0 0.0
        %1353 = vmatprep.subr.mxu0 0.0
        %1354 = vmatpush1.msra.mxu0 0.0
        %1355 = vmatprep.subr.mxu0 0.0
        %1356 = vmatpush1.msra.mxu0 0.0
        %1357 = vmatprep.subr.mxu0 0.0
        %1358 = vmatpush1.msra.mxu0 0.0
        %1359 = vmatprep.subr.mxu0 0.0
        %1360 = vmatpush1.msra.mxu0 0.0
        %1361 = vmatprep.subr.mxu0 0.0
        %1362 = vmatpush1.msra.mxu0 0.0
        %1363 = vmatprep.subr.mxu0 0.0
        %1364 = vmatpush1.msra.mxu0 0.0
        %1365 = vmatprep.subr.mxu0 0.0
        %1366 = vmatpush1.msra.mxu0 0.0
        %1367 = vmatprep.subr.mxu0 0.0
        %1368 = vmatpush1.msra.mxu0 0.0
        %1369 = vmatprep.subr.mxu0 0.0
        %1370 = vmatpush1.msra.mxu0 0.0
        %1371 = vmatprep.subr.mxu0 0.0
        %1372 = vmatpush1.msra.mxu0 0.0
        %1373 = vmatprep.subr.mxu0 0.0
        %1374 = vmatpush1.msra.mxu0 0.0
        %1375 = vmatprep.subr.mxu0 0.0
        %1376 = vmatpush1.msra.mxu0 0.0
        %1377 = vmatprep.subr.mxu0 0.0
        %1378 = vmatpush1.msra.mxu0 0.0
        %1379 = vmatprep.subr.mxu0 0.0
        %1380 = vmatpush1.msra.mxu0 0.0
        %1381 = vmatprep.subr.mxu0 0.0
        %1382 = vmatpush1.msra.mxu0 0.0
        %1383 = vmatprep.subr.mxu0 0.0
        %1384 = vmatpush1.msra.mxu0 0.0
        %1385 = vmatprep.subr.mxu0 0.0
        %1386 = vmatpush1.msra.mxu0 0.0
        %1387 = vmatprep.subr.mxu0 0.0
        %1388 = vmatpush1.msra.mxu0 0.0
        %1389 = vmatprep.subr.mxu0 0.0
        %1390 = vmatpush1.msra.mxu0 0.0
        %1391 = vmatprep.subr.mxu0 0.0
        %1392 = vmatpush1.msra.mxu0 0.0
        %1393 = vmatprep.mubr.f32.mxu0 0.0
        %1394 = vmatmul.mubr.f32.gmra.mrb[0].mxu0 %v1318
        %v1395 = vpop.f32.mrb[0].mxu0
        %v1396 = vadd.f32 0.0, %v1395
        %v1397 = vpop.f32.mrb[0].mxu0
        %1398 = vmatprep.mubr.f32.mxu0 0.0
        %1399 = vmatmul.mubr.f32.gmra.mrb[0].mxu0 %v1321
        %v1400 = vpop.f32.mrb[0].mxu0
        %v1401 = vadd.f32 0.0, %v1400
        %v1402 = vpop.f32.mrb[0].mxu0
        %1403 = vmatprep.mubr.f32.mxu0 0.0
        %1404 = vmatmul.mubr.f32.gmra.mrb[0].mxu0 %v1324
        %v1405 = vpop.f32.mrb[0].mxu0
        %v1406 = vadd.f32 0.0, %v1405
        %v1407 = vpop.f32.mrb[0].mxu0
        %1408 = vmatprep.mubr.f32.mxu0 0.0
        %1409 = vmatmul.mubr.f32.gmra.mrb[0].mxu0 %v1327
        %v1410 = vpop.f32.mrb[0].mxu0
        %v1411 = vadd.f32 0.0, %v1410
        %v1412 = vpop.f32.mrb[0].mxu0
        %1413 = vdwg.mxu0
        %v1414 = vmul.f32 %v1396, %v1153
        %v1415 = vadd.f32 %v1414, 0.0
        %v1416 = vmul.f32 %v1401, %v1158
        %v1417 = vadd.f32 %v1415, %v1416
        %v1418 = vmul.f32 %v1406, %v1163
        %v1419 = vadd.f32 %v1417, %v1418
        %v1420 = vmul.f32 %v1411, %v1168
        %v1421 = vadd.f32 %v1419, %v1420
        %v1422 = vld [vmem:[%s745] sm:$0xff]
        %v1423 = vld [vmem:[%s745 + $0x8] sm:$0xff]
        %v1424 = vld [vmem:[%s745 + $0x10] sm:$0xff]
        %v1425 = vld [vmem:[%s745 + $0x18] sm:$0xff]
        %v1426 = vld [vmem:[%s745 + $0x20] sm:$0xff]
        %v1427 = vld [vmem:[%s745 + $0x28] sm:$0xff]
        %v1428 = vld [vmem:[%s745 + $0x30] sm:$0xff]
        %v1429 = vld [vmem:[%s745 + $0x38] sm:$0xff]
        %v1430 = vld [vmem:[%s745 + $0x40] sm:$0xff]
        %v1431 = vld [vmem:[%s745 + $0x48] sm:$0xff]
        %v1432 = vld [vmem:[%s745 + $0x50] sm:$0xff]
        %v1433 = vld [vmem:[%s745 + $0x58] sm:$0xff]
        %v1434 = vld [vmem:[%s745 + $0x60] sm:$0xff]
        %v1435 = vld [vmem:[%s745 + $0x68] sm:$0xff]
        %v1436 = vld [vmem:[%s745 + $0x70] sm:$0xff]
        %v1437 = vld [vmem:[%s745 + $0x78] sm:$0xff]
        %v1438 = vld [vmem:[%s885] sm:$0x1]
        %v1440 = vlaneseq
        %v1441 = vshrl.u32 %v1440, 7
        %v1442 = vsub.s32 0, %v1441
        %v1443 = vrot.slane %v1438, %v1442
        %1445 = vmatprep.subr.mxu0 0.0
        %1446 = vmatpush1.msra.mxu0 %v1422
        %1447 = vmatprep.subr.mxu0 0.0
        %1448 = vmatpush1.msra.mxu0 %v1423
        %1449 = vmatprep.subr.mxu0 0.0
        %1450 = vmatpush1.msra.mxu0 %v1424
        %1451 = vmatprep.subr.mxu0 0.0
        %1452 = vmatpush1.msra.mxu0 %v1425
        %1453 = vmatprep.subr.mxu0 0.0
        %1454 = vmatpush1.msra.mxu0 %v1426
        %1455 = vmatprep.subr.mxu0 0.0
        %1456 = vmatpush1.msra.mxu0 %v1427
        %1457 = vmatprep.subr.mxu0 0.0
        %1458 = vmatpush1.msra.mxu0 %v1428
        %1459 = vmatprep.subr.mxu0 0.0
        %1460 = vmatpush1.msra.mxu0 %v1429
        %1461 = vmatprep.subr.mxu0 0.0
        %1462 = vmatpush1.msra.mxu0 %v1430
        %1463 = vmatprep.subr.mxu0 0.0
        %1464 = vmatpush1.msra.mxu0 %v1431
        %1465 = vmatprep.subr.mxu0 0.0
        %1466 = vmatpush1.msra.mxu0 %v1432
        %1467 = vmatprep.subr.mxu0 0.0
        %1468 = vmatpush1.msra.mxu0 %v1433
        %1469 = vmatprep.subr.mxu0 0.0
        %1470 = vmatpush1.msra.mxu0 %v1434
        %1471 = vmatprep.subr.mxu0 0.0
        %1472 = vmatpush1.msra.mxu0 %v1435
        %1473 = vmatprep.subr.mxu0 0.0
        %1474 = vmatpush1.msra.mxu0 %v1436
        %1475 = vmatprep.subr.mxu0 0.0
        %1476 = vmatpush1.msra.mxu0 %v1437
        %1477 = vmatprep.subr.mxu0 0.0
        %1478 = vmatpush1.msra.mxu0 0.0
        %1479 = vmatprep.subr.mxu0 0.0
        %1480 = vmatpush1.msra.mxu0 0.0
        %1481 = vmatprep.subr.mxu0 0.0
        %1482 = vmatpush1.msra.mxu0 0.0
        %1483 = vmatprep.subr.mxu0 0.0
        %1484 = vmatpush1.msra.mxu0 0.0
        %1485 = vmatprep.subr.mxu0 0.0
        %1486 = vmatpush1.msra.mxu0 0.0
        %1487 = vmatprep.subr.mxu0 0.0
        %1488 = vmatpush1.msra.mxu0 0.0
        %1489 = vmatprep.subr.mxu0 0.0
        %1490 = vmatpush1.msra.mxu0 0.0
        %1491 = vmatprep.subr.mxu0 0.0
        %1492 = vmatpush1.msra.mxu0 0.0
        %1493 = vmatprep.subr.mxu0 0.0
        %1494 = vmatpush1.msra.mxu0 0.0
        %1495 = vmatprep.subr.mxu0 0.0
        %1496 = vmatpush1.msra.mxu0 0.0
        %1497 = vmatprep.subr.mxu0 0.0
        %1498 = vmatpush1.msra.mxu0 0.0
        %1499 = vmatprep.subr.mxu0 0.0
        %1500 = vmatpush1.msra.mxu0 0.0
        %1501 = vmatprep.subr.mxu0 0.0
        %1502 = vmatpush1.msra.mxu0 0.0
        %1503 = vmatprep.subr.mxu0 0.0
        %1504 = vmatpush1.msra.mxu0 0.0
        %1505 = vmatprep.subr.mxu0 0.0
        %1506 = vmatpush1.msra.mxu0 0.0
        %1507 = vmatprep.subr.mxu0 0.0
        %1508 = vmatpush1.msra.mxu0 0.0
        %1509 = vmatprep.mubr.f32.mxu0 0.0
        %1510 = vmatmul.mubr.f32.gmra.mrb[0].mxu0 %v1421
        %v1511 = vpop.f32.mrb[0].mxu0
        %v1512 = vadd.f32 %v1443, %v1511
        %v1513 = vpop.f32.mrb[0].mxu0
        %1514 = vdwg.mxu0
        %v1515 = vadd.f32 %v1512, %v939
        %v1516 = vld [vmem:[%s888] sm:$0x1]
        %v1517 = vld [vmem:[%s891] sm:$0x1]
        %1518 = vadd.xlane.f32.xlu0 %v1515
        %v1519 = vpop.xlane.xlu0 %1518
        %v1520 = vrcp.pop 128.0
        %v1521 = vmul.f32 %v1519, %v1520
        %v1522 = vsub.f32 %v1515, %v1521
        %v1523 = vmul.f32 %v1522, %v1522
        %1524 = vadd.xlane.f32.xlu0 %v1523
        %v1525 = vpop.xlane.xlu0 %1524
        %v1526 = vmul.f32 %v1525, %v1520
        %v1527 = vadd.f32 %v1526, 1e-05
        %v1528 = vrsqrt.pop %v1527
        %v1529 = vmul.f32 %v1522, %v1528
        %v1531 = vlaneseq
        %v1532 = vshrl.u32 %v1531, 7
        %v1533 = vsub.s32 0, %v1532
        %v1534 = vrot.slane %v1516, %v1533
        %v1536 = vmul.f32 %v1529, %v1534
        %v1538 = vlaneseq
        %v1539 = vshrl.u32 %v1538, 7
        %v1540 = vsub.s32 0, %v1539
        %v1541 = vrot.slane %v1517, %v1540
        %v1543 = vadd.f32 %v1536, %v1541
        %v1544 = vld [vmem:[%s754] sm:$0xff]
        %v1545 = vld [vmem:[%s754 + $0x8] sm:$0xff]
        %v1546 = vld [vmem:[%s754 + $0x10] sm:$0xff]
        %v1547 = vld [vmem:[%s754 + $0x18] sm:$0xff]
        %v1548 = vld [vmem:[%s754 + $0x20] sm:$0xff]
        %v1549 = vld [vmem:[%s754 + $0x28] sm:$0xff]
        %v1550 = vld [vmem:[%s754 + $0x30] sm:$0xff]
        %v1551 = vld [vmem:[%s754 + $0x38] sm:$0xff]
        %v1552 = vld [vmem:[%s754 + $0x40] sm:$0xff]
        %v1553 = vld [vmem:[%s754 + $0x48] sm:$0xff]
        %v1554 = vld [vmem:[%s754 + $0x50] sm:$0xff]
        %v1555 = vld [vmem:[%s754 + $0x58] sm:$0xff]
        %v1556 = vld [vmem:[%s754 + $0x60] sm:$0xff]
        %v1557 = vld [vmem:[%s754 + $0x68] sm:$0xff]
        %v1558 = vld [vmem:[%s754 + $0x70] sm:$0xff]
        %v1559 = vld [vmem:[%s754 + $0x78] sm:$0xff]
        %v1560 = vld [vmem:[%s754 + $0x80] sm:$0xff]
        %v1561 = vld [vmem:[%s754 + $0x88] sm:$0xff]
        %v1562 = vld [vmem:[%s754 + $0x90] sm:$0xff]
        %v1563 = vld [vmem:[%s754 + $0x98] sm:$0xff]
        %v1564 = vld [vmem:[%s754 + $0xa0] sm:$0xff]
        %v1565 = vld [vmem:[%s754 + $0xa8] sm:$0xff]
        %v1566 = vld [vmem:[%s754 + $0xb0] sm:$0xff]
        %v1567 = vld [vmem:[%s754 + $0xb8] sm:$0xff]
        %v1568 = vld [vmem:[%s754 + $0xc0] sm:$0xff]
        %v1569 = vld [vmem:[%s754 + $0xc8] sm:$0xff]
        %v1570 = vld [vmem:[%s754 + $0xd0] sm:$0xff]
        %v1571 = vld [vmem:[%s754 + $0xd8] sm:$0xff]
        %v1572 = vld [vmem:[%s754 + $0xe0] sm:$0xff]
        %v1573 = vld [vmem:[%s754 + $0xe8] sm:$0xff]
        %v1574 = vld [vmem:[%s754 + $0xf0] sm:$0xff]
        %v1575 = vld [vmem:[%s754 + $0xf8] sm:$0xff]
        %v1576 = vld [vmem:[%s895] sm:$0x3]
        %v1578 = vlaneseq
        %v1579 = vshrl.u32 %v1578, 7
        %v1580 = vsub.s32 0, %v1579
        %v1581 = vrot.slane %v1576, %v1580
        %v1582 = vlaneseq
        %v1583 = vshrl.u32 %v1582, 7
        %v1584 = vsub.s32 1, %v1583
        %v1585 = vrot.slane %v1576, %v1584
        %1588 = vmatprep.subr.mxu0 %v1545
        %1589 = vmatpush1.msra.mxu0 %v1544
        %1590 = vmatprep.subr.mxu0 %v1547
        %1591 = vmatpush1.msra.mxu0 %v1546
        %1592 = vmatprep.subr.mxu0 %v1549
        %1593 = vmatpush1.msra.mxu0 %v1548
        %1594 = vmatprep.subr.mxu0 %v1551
        %1595 = vmatpush1.msra.mxu0 %v1550
        %1596 = vmatprep.subr.mxu0 %v1553
        %1597 = vmatpush1.msra.mxu0 %v1552
        %1598 = vmatprep.subr.mxu0 %v1555
        %1599 = vmatpush1.msra.mxu0 %v1554
        %1600 = vmatprep.subr.mxu0 %v1557
        %1601 = vmatpush1.msra.mxu0 %v1556
        %1602 = vmatprep.subr.mxu0 %v1559
        %1603 = vmatpush1.msra.mxu0 %v1558
        %1604 = vmatprep.subr.mxu0 %v1561
        %1605 = vmatpush1.msra.mxu0 %v1560
        %1606 = vmatprep.subr.mxu0 %v1563
        %1607 = vmatpush1.msra.mxu0 %v1562
        %1608 = vmatprep.subr.mxu0 %v1565
        %1609 = vmatpush1.msra.mxu0 %v1564
        %1610 = vmatprep.subr.mxu0 %v1567
        %1611 = vmatpush1.msra.mxu0 %v1566
        %1612 = vmatprep.subr.mxu0 %v1569
        %1613 = vmatpush1.msra.mxu0 %v1568
        %1614 = vmatprep.subr.mxu0 %v1571
        %1615 = vmatpush1.msra.mxu0 %v1570
        %1616 = vmatprep.subr.mxu0 %v1573
        %1617 = vmatpush1.msra.mxu0 %v1572
        %1618 = vmatprep.subr.mxu0 %v1575
        %1619 = vmatpush1.msra.mxu0 %v1574
        %1620 = vmatprep.subr.mxu0 0.0
        %1621 = vmatpush1.msra.mxu0 0.0
        %1622 = vmatprep.subr.mxu0 0.0
        %1623 = vmatpush1.msra.mxu0 0.0
        %1624 = vmatprep.subr.mxu0 0.0
        %1625 = vmatpush1.msra.mxu0 0.0
        %1626 = vmatprep.subr.mxu0 0.0
        %1627 = vmatpush1.msra.mxu0 0.0
        %1628 = vmatprep.subr.mxu0 0.0
        %1629 = vmatpush1.msra.mxu0 0.0
        %1630 = vmatprep.subr.mxu0 0.0
        %1631 = vmatpush1.msra.mxu0 0.0
        %1632 = vmatprep.subr.mxu0 0.0
        %1633 = vmatpush1.msra.mxu0 0.0
        %1634 = vmatprep.subr.mxu0 0.0
        %1635 = vmatpush1.msra.mxu0 0.0
        %1636 = vmatprep.subr.mxu0 0.0
        %1637 = vmatpush1.msra.mxu0 0.0
        %1638 = vmatprep.subr.mxu0 0.0
        %1639 = vmatpush1.msra.mxu0 0.0
        %1640 = vmatprep.subr.mxu0 0.0
        %1641 = vmatpush1.msra.mxu0 0.0
        %1642 = vmatprep.subr.mxu0 0.0
        %1643 = vmatpush1.msra.mxu0 0.0
        %1644 = vmatprep.subr.mxu0 0.0
        %1645 = vmatpush1.msra.mxu0 0.0
        %1646 = vmatprep.subr.mxu0 0.0
        %1647 = vmatpush1.msra.mxu0 0.0
        %1648 = vmatprep.subr.mxu0 0.0
        %1649 = vmatpush1.msra.mxu0 0.0
        %1650 = vmatprep.subr.mxu0 0.0
        %1651 = vmatpush1.msra.mxu0 0.0
        %1652 = vmatprep.mubr.f32.mxu0 0.0
        %1653 = vmatmul.mubr.f32.gmra.mrb[0].mxu0 %v1543
        %v1654 = vpop.f32.mrb[0].mxu0
        %v1655 = vadd.f32 %v1581, %v1654
        %v1656 = vpop.f32.mrb[0].mxu0
        %v1657 = vadd.f32 %v1585, %v1656
        %1658 = vdwg.mxu0
        %v1659 = vmul.f32 %v1655, %v1655
        %v1660 = vmul.f32 %v1657, %v1657
        %v1661 = vmul.f32 %v1655, %v1659
        %v1662 = vmul.f32 %v1657, %v1660
        %v1663 = vmul.f32 %v1661, 0.044715
        %v1664 = vmul.f32 %v1662, 0.044715
        %v1665 = vadd.f32 %v1655, %v1663
        %v1666 = vadd.f32 %v1657, %v1664
        %v1667 = vmul.f32 %v1665, 0.7978846
        %v1668 = vmul.f32 %v1666, 0.7978846
        %v1669 = vtanh.pop %v1667
        %v1670 = vtanh.pop %v1668
        %v1671 = vadd.f32 %v1669, 1.0
        %v1672 = vadd.f32 %v1670, 1.0
        %v1673 = vmul.f32 %v1671, 0.5
        %v1674 = vmul.f32 %v1672, 0.5
        %v1675 = vmul.f32 %v1655, %v1673
        %v1676 = vmul.f32 %v1657, %v1674
        %v1677 = vld [vmem:[%s763] sm:$0xff]
        %v1678 = vld [vmem:[%s763 + $0x8] sm:$0xff]
        %v1679 = vld [vmem:[%s763 + $0x10] sm:$0xff]
        %v1680 = vld [vmem:[%s763 + $0x18] sm:$0xff]
        %v1681 = vld [vmem:[%s763 + $0x20] sm:$0xff]
        %v1682 = vld [vmem:[%s763 + $0x28] sm:$0xff]
        %v1683 = vld [vmem:[%s763 + $0x30] sm:$0xff]
        %v1684 = vld [vmem:[%s763 + $0x38] sm:$0xff]
        %v1685 = vld [vmem:[%s763 + $0x40] sm:$0xff]
        %v1686 = vld [vmem:[%s763 + $0x48] sm:$0xff]
        %v1687 = vld [vmem:[%s763 + $0x50] sm:$0xff]
        %v1688 = vld [vmem:[%s763 + $0x58] sm:$0xff]
        %v1689 = vld [vmem:[%s763 + $0x60] sm:$0xff]
        %v1690 = vld [vmem:[%s763 + $0x68] sm:$0xff]
        %v1691 = vld [vmem:[%s763 + $0x70] sm:$0xff]
        %v1692 = vld [vmem:[%s763 + $0x78] sm:$0xff]
        %v1693 = vld [vmem:[%s763 + $0x80] sm:$0xff]
        %v1694 = vld [vmem:[%s763 + $0x88] sm:$0xff]
        %v1695 = vld [vmem:[%s763 + $0x90] sm:$0xff]
        %v1696 = vld [vmem:[%s763 + $0x98] sm:$0xff]
        %v1697 = vld [vmem:[%s763 + $0xa0] sm:$0xff]
        %v1698 = vld [vmem:[%s763 + $0xa8] sm:$0xff]
        %v1699 = vld [vmem:[%s763 + $0xb0] sm:$0xff]
        %v1700 = vld [vmem:[%s763 + $0xb8] sm:$0xff]
        %v1701 = vld [vmem:[%s763 + $0xc0] sm:$0xff]
        %v1702 = vld [vmem:[%s763 + $0xc8] sm:$0xff]
        %v1703 = vld [vmem:[%s763 + $0xd0] sm:$0xff]
        %v1704 = vld [vmem:[%s763 + $0xd8] sm:$0xff]
        %v1705 = vld [vmem:[%s763 + $0xe0] sm:$0xff]
        %v1706 = vld [vmem:[%s763 + $0xe8] sm:$0xff]
        %v1707 = vld [vmem:[%s763 + $0xf0] sm:$0xff]
        %v1708 = vld [vmem:[%s763 + $0xf8] sm:$0xff]
        %v1709 = vld [vmem:[%s898] sm:$0x1]
        %v1711 = vlaneseq
        %v1712 = vshrl.u32 %v1711, 7
        %v1713 = vsub.s32 0, %v1712
        %v1714 = vrot.slane %v1709, %v1713
        %1716 = vmatprep.subr.mxu0 0.0
        %1717 = vmatpush1.msra.mxu0 %v1677
        %1718 = vmatprep.subr.mxu0 0.0
        %1719 = vmatpush1.msra.mxu0 %v1678
        %1720 = vmatprep.subr.mxu0 0.0
        %1721 = vmatpush1.msra.mxu0 %v1679
        %1722 = vmatprep.subr.mxu0 0.0
        %1723 = vmatpush1.msra.mxu0 %v1680
        %1724 = vmatprep.subr.mxu0 0.0
        %1725 = vmatpush1.msra.mxu0 %v1681
        %1726 = vmatprep.subr.mxu0 0.0
        %1727 = vmatpush1.msra.mxu0 %v1682
        %1728 = vmatprep.subr.mxu0 0.0
        %1729 = vmatpush1.msra.mxu0 %v1683
        %1730 = vmatprep.subr.mxu0 0.0
        %1731 = vmatpush1.msra.mxu0 %v1684
        %1732 = vmatprep.subr.mxu0 0.0
        %1733 = vmatpush1.msra.mxu0 %v1685
        %1734 = vmatprep.subr.mxu0 0.0
        %1735 = vmatpush1.msra.mxu0 %v1686
        %1736 = vmatprep.subr.mxu0 0.0
        %1737 = vmatpush1.msra.mxu0 %v1687
        %1738 = vmatprep.subr.mxu0 0.0
        %1739 = vmatpush1.msra.mxu0 %v1688
        %1740 = vmatprep.subr.mxu0 0.0
        %1741 = vmatpush1.msra.mxu0 %v1689
        %1742 = vmatprep.subr.mxu0 0.0
        %1743 = vmatpush1.msra.mxu0 %v1690
        %1744 = vmatprep.subr.mxu0 0.0
        %1745 = vmatpush1.msra.mxu0 %v1691
        %1746 = vmatprep.subr.mxu0 0.0
        %1747 = vmatpush1.msra.mxu0 %v1692
        %1748 = vmatprep.subr.mxu0 0.0
        %1749 = vmatpush1.msra.mxu0 %v1693
        %1750 = vmatprep.subr.mxu0 0.0
        %1751 = vmatpush1.msra.mxu0 %v1694
        %1752 = vmatprep.subr.mxu0 0.0
        %1753 = vmatpush1.msra.mxu0 %v1695
        %1754 = vmatprep.subr.mxu0 0.0
        %1755 = vmatpush1.msra.mxu0 %v1696
        %1756 = vmatprep.subr.mxu0 0.0
        %1757 = vmatpush1.msra.mxu0 %v1697
        %1758 = vmatprep.subr.mxu0 0.0
        %1759 = vmatpush1.msra.mxu0 %v1698
        %1760 = vmatprep.subr.mxu0 0.0
        %1761 = vmatpush1.msra.mxu0 %v1699
        %1762 = vmatprep.subr.mxu0 0.0
        %1763 = vmatpush1.msra.mxu0 %v1700
        %1764 = vmatprep.subr.mxu0 0.0
        %1765 = vmatpush1.msra.mxu0 %v1701
        %1766 = vmatprep.subr.mxu0 0.0
        %1767 = vmatpush1.msra.mxu0 %v1702
        %1768 = vmatprep.subr.mxu0 0.0
        %1769 = vmatpush1.msra.mxu0 %v1703
        %1770 = vmatprep.subr.mxu0 0.0
        %1771 = vmatpush1.msra.mxu0 %v1704
        %1772 = vmatprep.subr.mxu0 0.0
        %1773 = vmatpush1.msra.mxu0 %v1705
        %1774 = vmatprep.subr.mxu0 0.0
        %1775 = vmatpush1.msra.mxu0 %v1706
        %1776 = vmatprep.subr.mxu0 0.0
        %1777 = vmatpush1.msra.mxu0 %v1707
        %1778 = vmatprep.subr.mxu0 0.0
        %1779 = vmatpush1.msra.mxu0 %v1708
        %1780 = vmatprep.mubr.f32.mxu0 %v1676
        %1781 = vmatmul.mubr.f32.gmra.mrb[0].mxu0 %v1675
        %v1782 = vpop.f32.mrb[0].mxu0
        %v1783 = vadd.f32 %v1714, %v1782
        %v1784 = vpop.f32.mrb[0].mxu0
        %1785 = vdwg.mxu0
        %v1786 = vadd.f32 %v1783, %v1543
        %v1787 = vld [vmem:[%s901] sm:$0x1]
        %v1788 = vld [vmem:[%s904] sm:$0x1]
        %1789 = vadd.xlane.f32.xlu0 %v1786
        %v1790 = vpop.xlane.xlu0 %1789
        %v1791 = vmul.f32 %v1790, %v1520
        %v1792 = vsub.f32 %v1786, %v1791
        %v1793 = vmul.f32 %v1792, %v1792
        %1794 = vadd.xlane.f32.xlu0 %v1793
        %v1795 = vpop.xlane.xlu0 %1794
        %v1796 = vmul.f32 %v1795, %v1520
        %v1797 = vadd.f32 %v1796, 1e-05
        %v1798 = vrsqrt.pop %v1797
        %v1799 = vmul.f32 %v1792, %v1798
        %v1801 = vlaneseq
        %v1802 = vshrl.u32 %v1801, 7
        %v1803 = vsub.s32 0, %v1802
        %v1804 = vrot.slane %v1787, %v1803
        %v1806 = vmul.f32 %v1799, %v1804
        %v1808 = vlaneseq
        %v1809 = vshrl.u32 %v1808, 7
        %v1810 = vsub.s32 0, %v1809
        %v1811 = vrot.slane %v1788, %v1810
        %v1813 = vadd.f32 %v1806, %v1811
        %1814 = vst [vmem:[#allocation2] sm:$0xff] %v1813
        %p1815 = scmp.eq.s32.totalorder %s45, 1
        // Predicated region
        $region117: #{codebert_classifier_forward.1} parent=99 // pred_check
          %p1816 = pneg %p1815
        $region118: #{codebert_classifier_forward.1} parent=99 // pred_check_branch
          %1818 = sbr.rel (%p1816) target = $region120
        $region119: #{codebert_classifier_forward.1} parent=99 // pred_region
          %v1819 = vld [vmem:[%s16] sm:$0xff]
          %v1820 = vld [vmem:[%s16 + $0x8] sm:$0xff]
          %v1821 = vld [vmem:[%s16 + $0x10] sm:$0xff]
          %v1822 = vld [vmem:[%s16 + $0x18] sm:$0xff]
          %v1823 = vld [vmem:[%s16 + $0x20] sm:$0xff]
          %v1824 = vld [vmem:[%s16 + $0x28] sm:$0xff]
          %v1825 = vld [vmem:[%s16 + $0x30] sm:$0xff]
          %v1826 = vld [vmem:[%s16 + $0x38] sm:$0xff]
          %v1827 = vld [vmem:[%s16 + $0x40] sm:$0xff]
          %v1828 = vld [vmem:[%s16 + $0x48] sm:$0xff]
          %v1829 = vld [vmem:[%s16 + $0x50] sm:$0xff]
          %v1830 = vld [vmem:[%s16 + $0x58] sm:$0xff]
          %v1831 = vld [vmem:[%s16 + $0x60] sm:$0xff]
          %v1832 = vld [vmem:[%s16 + $0x68] sm:$0xff]
          %v1833 = vld [vmem:[%s16 + $0x70] sm:$0xff]
          %v1834 = vld [vmem:[%s16 + $0x78] sm:$0xff]
          %v1835 = vld [vmem:[%s17] sm:$0x1]
          %1836 = vmatprep.subr.mxu0 0.0
          %1837 = vmatpush1.msra.mxu0 %v1819
          %1838 = vmatprep.subr.mxu0 0.0
          %1839 = vmatpush1.msra.mxu0 %v1820
          %1840 = vmatprep.subr.mxu0 0.0
          %1841 = vmatpush1.msra.mxu0 %v1821
          %1842 = vmatprep.subr.mxu0 0.0
          %1843 = vmatpush1.msra.mxu0 %v1822
          %1844 = vmatprep.subr.mxu0 0.0
          %1845 = vmatpush1.msra.mxu0 %v1823
          %1846 = vmatprep.subr.mxu0 0.0
          %1847 = vmatpush1.msra.mxu0 %v1824
          %1848 = vmatprep.subr.mxu0 0.0
          %1849 = vmatpush1.msra.mxu0 %v1825
          %1850 = vmatprep.subr.mxu0 0.0
          %1851 = vmatpush1.msra.mxu0 %v1826
          %1852 = vmatprep.subr.mxu0 0.0
          %1853 = vmatpush1.msra.mxu0 %v1827
          %1854 = vmatprep.subr.mxu0 0.0
          %1855 = vmatpush1.msra.mxu0 %v1828
          %1856 = vmatprep.subr.mxu0 0.0
          %1857 = vmatpush1.msra.mxu0 %v1829
          %1858 = vmatprep.subr.mxu0 0.0
          %1859 = vmatpush1.msra.mxu0 %v1830
          %1860 = vmatprep.subr.mxu0 0.0
          %1861 = vmatpush1.msra.mxu0 %v1831
          %1862 = vmatprep.subr.mxu0 0.0
          %1863 = vmatpush1.msra.mxu0 %v1832
          %1864 = vmatprep.subr.mxu0 0.0
          %1865 = vmatpush1.msra.mxu0 %v1833
          %1866 = vmatprep.subr.mxu0 0.0
          %1867 = vmatpush1.msra.mxu0 %v1834
          %1868 = vmatprep.subr.mxu0 0.0
          %1869 = vmatpush1.msra.mxu0 0.0
          %1870 = vmatprep.subr.mxu0 0.0
          %1871 = vmatpush1.msra.mxu0 0.0
          %1872 = vmatprep.subr.mxu0 0.0
          %1873 = vmatpush1.msra.mxu0 0.0
          %1874 = vmatprep.subr.mxu0 0.0
          %1875 = vmatpush1.msra.mxu0 0.0
          %1876 = vmatprep.subr.mxu0 0.0
          %1877 = vmatpush1.msra.mxu0 0.0
          %1878 = vmatprep.subr.mxu0 0.0
          %1879 = vmatpush1.msra.mxu0 0.0
          %1880 = vmatprep.subr.mxu0 0.0
          %1881 = vmatpush1.msra.mxu0 0.0
          %1882 = vmatprep.subr.mxu0 0.0
          %1883 = vmatpush1.msra.mxu0 0.0
          %1884 = vmatprep.subr.mxu0 0.0
          %1885 = vmatpush1.msra.mxu0 0.0
          %1886 = vmatprep.subr.mxu0 0.0
          %1887 = vmatpush1.msra.mxu0 0.0
          %1888 = vmatprep.subr.mxu0 0.0
          %1889 = vmatpush1.msra.mxu0 0.0
          %1890 = vmatprep.subr.mxu0 0.0
          %1891 = vmatpush1.msra.mxu0 0.0
          %1892 = vmatprep.subr.mxu0 0.0
          %1893 = vmatpush1.msra.mxu0 0.0
          %1894 = vmatprep.subr.mxu0 0.0
          %1895 = vmatpush1.msra.mxu0 0.0
          %1896 = vmatprep.subr.mxu0 0.0
          %1897 = vmatpush1.msra.mxu0 0.0
          %1898 = vmatprep.subr.mxu0 0.0
          %1899 = vmatpush1.msra.mxu0 0.0
          %1900 = vmatprep.mubr.f32.mxu0 0.0
          %1901 = vmatmul.mubr.f32.gmra.mrb[0].mxu0 %v1813
          %v1902 = vpop.f32.mrb[0].mxu0
          %v1903 = vadd.f32 %v1835, %v1902
          %v1904 = vpop.f32.mrb[0].mxu0
          %1905 = vdwg.mxu0
          %v1906 = vmax.f32 %v1903, 0.0
          %v1907 = vld [vmem:[%s18] sm:$0xff]
          %v1908 = vld [vmem:[%s18 + $0x8] sm:$0xff]
          %v1909 = vld [vmem:[%s18 + $0x10] sm:$0xff]
          %v1910 = vld [vmem:[%s18 + $0x18] sm:$0xff]
          %v1911 = vld [vmem:[%s18 + $0x20] sm:$0xff]
          %v1912 = vld [vmem:[%s18 + $0x28] sm:$0xff]
          %v1913 = vld [vmem:[%s18 + $0x30] sm:$0xff]
          %v1914 = vld [vmem:[%s18 + $0x38] sm:$0xff]
          %v1915 = vld [vmem:[%s18 + $0x40] sm:$0xff]
          %v1916 = vld [vmem:[%s18 + $0x48] sm:$0xff]
          %v1917 = vld [vmem:[%s18 + $0x50] sm:$0xff]
          %v1918 = vld [vmem:[%s18 + $0x58] sm:$0xff]
          %v1919 = vld [vmem:[%s18 + $0x60] sm:$0xff]
          %v1920 = vld [vmem:[%s18 + $0x68] sm:$0xff]
          %v1921 = vld [vmem:[%s18 + $0x70] sm:$0xff]
          %v1922 = vld [vmem:[%s18 + $0x78] sm:$0xff]
          %v1923 = vld [vmem:[%s19] sm:$0x1]
          %1924 = vmatprep.subr.mxu0 0.0
          %1925 = vmatpush1.msra.mxu0 %v1907
          %1926 = vmatprep.subr.mxu0 0.0
          %1927 = vmatpush1.msra.mxu0 %v1908
          %1928 = vmatprep.subr.mxu0 0.0
          %1929 = vmatpush1.msra.mxu0 %v1909
          %1930 = vmatprep.subr.mxu0 0.0
          %1931 = vmatpush1.msra.mxu0 %v1910
          %1932 = vmatprep.subr.mxu0 0.0
          %1933 = vmatpush1.msra.mxu0 %v1911
          %1934 = vmatprep.subr.mxu0 0.0
          %1935 = vmatpush1.msra.mxu0 %v1912
          %1936 = vmatprep.subr.mxu0 0.0
          %1937 = vmatpush1.msra.mxu0 %v1913
          %1938 = vmatprep.subr.mxu0 0.0
          %1939 = vmatpush1.msra.mxu0 %v1914
          %1940 = vmatprep.subr.mxu0 0.0
          %1941 = vmatpush1.msra.mxu0 %v1915
          %1942 = vmatprep.subr.mxu0 0.0
          %1943 = vmatpush1.msra.mxu0 %v1916
          %1944 = vmatprep.subr.mxu0 0.0
          %1945 = vmatpush1.msra.mxu0 %v1917
          %1946 = vmatprep.subr.mxu0 0.0
          %1947 = vmatpush1.msra.mxu0 %v1918
          %1948 = vmatprep.subr.mxu0 0.0
          %1949 = vmatpush1.msra.mxu0 %v1919
          %1950 = vmatprep.subr.mxu0 0.0
          %1951 = vmatpush1.msra.mxu0 %v1920
          %1952 = vmatprep.subr.mxu0 0.0
          %1953 = vmatpush1.msra.mxu0 %v1921
          %1954 = vmatprep.subr.mxu0 0.0
          %1955 = vmatpush1.msra.mxu0 %v1922
          %1956 = vmatprep.subr.mxu0 0.0
          %1957 = vmatpush1.msra.mxu0 0.0
          %1958 = vmatprep.subr.mxu0 0.0
          %1959 = vmatpush1.msra.mxu0 0.0
          %1960 = vmatprep.subr.mxu0 0.0
          %1961 = vmatpush1.msra.mxu0 0.0
          %1962 = vmatprep.subr.mxu0 0.0
          %1963 = vmatpush1.msra.mxu0 0.0
          %1964 = vmatprep.subr.mxu0 0.0
          %1965 = vmatpush1.msra.mxu0 0.0
          %1966 = vmatprep.subr.mxu0 0.0
          %1967 = vmatpush1.msra.mxu0 0.0
          %1968 = vmatprep.subr.mxu0 0.0
          %1969 = vmatpush1.msra.mxu0 0.0
          %1970 = vmatprep.subr.mxu0 0.0
          %1971 = vmatpush1.msra.mxu0 0.0
          %1972 = vmatprep.subr.mxu0 0.0
          %1973 = vmatpush1.msra.mxu0 0.0
          %1974 = vmatprep.subr.mxu0 0.0
          %1975 = vmatpush1.msra.mxu0 0.0
          %1976 = vmatprep.subr.mxu0 0.0
          %1977 = vmatpush1.msra.mxu0 0.0
          %1978 = vmatprep.subr.mxu0 0.0
          %1979 = vmatpush1.msra.mxu0 0.0
          %1980 = vmatprep.subr.mxu0 0.0
          %1981 = vmatpush1.msra.mxu0 0.0
          %1982 = vmatprep.subr.mxu0 0.0
          %1983 = vmatpush1.msra.mxu0 0.0
          %1984 = vmatprep.subr.mxu0 0.0
          %1985 = vmatpush1.msra.mxu0 0.0
          %1986 = vmatprep.subr.mxu0 0.0
          %1987 = vmatpush1.msra.mxu0 0.0
          %1988 = vmatprep.mubr.f32.mxu0 0.0
          %1989 = vmatmul.mubr.f32.gmra.mrb[0].mxu0 %v1906
          %v1990 = vpop.f32.mrb[0].mxu0
          %v1991 = vadd.f32 %v1923, %v1990
          %v1992 = vpop.f32.mrb[0].mxu0
          %1993 = vdwg.mxu0
          %1994 = vst [vmem:[%s866] sm:$0x1] %v1991
        $region120: #{codebert_classifier_forward.1} parent=99 // pred_fallthru
          _
        %s1995 = sand.u32 %s550, 1
        %s1996 = scalar_lea.sflag [#allocation5], %s1995
        %s1997 = sand.u32 %s550, 1
        %s1998 = scalar_lea.vmem [#allocation9], %s1997
        // Predicated region
        $region121: #{codebert_classifier_forward.1} parent=99 // pred_check
          %p1999 = pneg %p560
        $region122: #{codebert_classifier_forward.1} parent=99 // pred_check_branch
          %2001 = sbr.rel (%p1999) target = $region124
        $region123: #{codebert_classifier_forward.1} parent=99 // pred_region
          %s2003 = ssub.s32 16, 16
          %2004 = vsyncadd %s1996, %s2003
          %s2005 = smul.addr %s44, 16
          %s2006 = scalar_lea.hbm %s20, %s2005
          %s2008 = sshll.u32 %s1998, 4
          %s2009 = int_to_ptr.vmem [resolvable:$true] %s2008
          %2011 = dma.vmem_to_hbm [thread:$0]  %s2009, 16, %s2006, %s1996
        $region124: #{codebert_classifier_forward.1} parent=99 // pred_fallthru
          _
      $region100: #{codebert_classifier_forward.1} parent=5 // pred_fallthru
        _
      %p2012 = scmp.le.s32.totalorder 2, %s35
      // Predicated region
      $region125: #{codebert_classifier_forward.1} parent=5 // pred_check
        %p2013 = pneg %p2012
      $region126: #{codebert_classifier_forward.1} parent=5 // pred_check_branch
        %2015 = sbr.rel (%p2013) target = $region128
      $region127: #{codebert_classifier_forward.1} parent=5 // pred_region
        %s2016 = ssub.s32 %s35, 2
        // Predicated region
        $region129: #{codebert_classifier_forward.1} parent=127 // pred_check
          %p2017 = pneg %p566
        $region130: #{codebert_classifier_forward.1} parent=127 // pred_check_branch
          %2019 = sbr.rel (%p2017) target = $region132
        $region131: #{codebert_classifier_forward.1} parent=127 // pred_region
          %s2020 = sand.u32 %s551, 1
          %s2021 = scalar_lea.sflag [#allocation5], %s2020
          %s2022 = sand.u32 %s551, 1
          %s2023 = scalar_lea.vmem [#allocation9], %s2022
          %2024 = dma.done %s2021, 16
        $region132: #{codebert_classifier_forward.1} parent=127 // pred_fallthru
          _
      $region128: #{codebert_classifier_forward.1} parent=5 // pred_fallthru
        _
    $region6: #{codebert_classifier_forward.1} parent=1 // loop_footer
      %s39 = sadd.s32 1, %s35
    $region7: #{codebert_classifier_forward.1} parent=1 // loop_footer_branch
      %34 = sbr.rel target = $region3
    $region8: #{codebert_classifier_forward.1} parent=1 // loop_exit
      _
    %2025 = vsyncpa [#allocation4], 1
    %s2026 = scalar_lea.sflag [#allocation4], 1
    %2027 = vsyncpa %s2026, 1
    %2028 = vsyncpa [#allocation7], 1
    %s2029 = scalar_lea.sflag [#allocation7], 1
    %2030 = vsyncpa %s2029, 1
    %2031 = vsyncpa [#allocation5], 1
    %s2032 = scalar_lea.sflag [#allocation5], 1
    %2033 = vsyncpa %s2032, 1

</llo_original>
